<compile_context>
chip_gen: v6e
topology: v6e:2x2x1
jax: 0.10.0
libtpu: 0.0.40
codegen_flags: <defaults>
</compile_context>

<pallas_src>
import jax
import jax.numpy as jnp
from jax import lax
from jax.experimental import pallas as pl
from jax.experimental.pallas import tpu as pltpu

HIDDEN = 10      # hidden width of layer_1 / layer_2
LANES = 128      # TPU lane width (fast axis)
SUB = 8          # sublane rows per in-register sub-chunk -> one f32 vreg/value
S_BLOCK = 128    # sublane rows per grid step (=> 128*128 = 16K batch elems)


def _round_up(x, m):
    return ((x + m - 1) // m) * m


def _tree_sum(vals):
    """Pairwise/tree reduction so the adds expose ILP to all 4 VALU slots."""
    vals = list(vals)
    while len(vals) > 1:
        nxt = [vals[i] + vals[i + 1] for i in range(0, len(vals) - 1, 2)]
        if len(vals) % 2:
            nxt.append(vals[-1])
        vals = nxt
    return vals[0]


def mlp_kernel(w1_ref, b1_ref, w2_ref, b2_ref, w3_ref, b3_ref, x_ref, o_ref):
    """Fused MLP forward for one batch block.

    x_ref: (2, s_block, 128) VMEM -- feature dim leading, batch on (sublane, lane)
    o_ref: (s_block, 128) VMEM    -- lane-dense, full-sublane output tiles
    w*/b*: small weight tables in SMEM; scalar reads hoisted out of the loop.
    """
    # Hoist loop-invariant scalar weight reads out of the sub-chunk loop so the
    # inner loop issues only vector-scalar VPU ops, not fresh SMEM reads.
    w1 = [[w1_ref[i, j] for j in range(HIDDEN)] for i in range(2)]
    b1 = [b1_ref[j] for j in range(HIDDEN)]
    w2 = [[w2_ref[j, k] for k in range(HIDDEN)] for j in range(HIDDEN)]
    b2 = [b2_ref[k] for k in range(HIDDEN)]
    w3 = [w3_ref[k, 0] for k in range(HIDDEN)]
    b3 = b3_ref[0]

    num_sub = o_ref.shape[0] // SUB  # static Python int

    def body(s, carry):
        r = pl.multiple_of(s * SUB, SUB)
        x0 = x_ref[0, pl.ds(r, SUB), :]          # (8, 128) -- one vreg
        x1 = x_ref[1, pl.ds(r, SUB), :]          # (8, 128)

        # layer_1: 2 -> 10, ReLU (10 independent 2-term FMAs)
        h1 = [
            jnp.maximum(x0 * w1[0][j] + x1 * w1[1][j] + b1[j], 0.0)
            for j in range(HIDDEN)
        ]

        # layer_2 (10 -> 10, ReLU) fused with layer_3 (10 -> 1).
        # Tree-sum the 10-term dot per k; accumulate k-contributions into two
        # partial sums to break the serial add chain.
        acc_e = None
        acc_o = None
        for k in range(HIDDEN):
            prods = [h1[j] * w2[j][k] for j in range(HIDDEN)]
            h2k = jnp.maximum(_tree_sum(prods) + b2[k], 0.0)
            contrib = h2k * w3[k]
            if k % 2 == 0:
                acc_e = contrib if acc_e is None else acc_e + contrib
            else:
                acc_o = contrib if acc_o is None else acc_o + contrib
        out = acc_e + acc_o + b3

        o_ref[pl.ds(r, SUB), :] = out.astype(o_ref.dtype)
        return carry

    lax.fori_loop(0, num_sub, body, 0, unroll=True)


def circle_model_v2_forward(x, params, *, s_block=S_BLOCK):
    """x: (N, 2) float32. Returns (N, 1) float32, matching the PyTorch module."""
    w1, b1, w2, b2, w3, b3 = params
    N = x.shape[0]

    # Batch is mapped to (sublane-row, lane) pairs: n_sub rows of 128 lanes.
    n_sub = _round_up(pl.cdiv(N, LANES), SUB)
    s_block = max(SUB, (min(s_block, n_sub) // SUB) * SUB)
    n_sub = _round_up(n_sub, s_block)
    n_pad = n_sub * LANES
    grid = (n_sub // s_block,)

    # Lane-major relayout in the wrapper: (N, 2) -> (2, n_sub, 128).  XLA fuses
    # pad + transpose + reshape into one copy pass; avoidable entirely if the
    # caller already supplies x in this layout.
    x_t = jnp.pad(x, ((0, n_pad - N), (0, 0))).T.reshape(2, n_sub, LANES)

    smem = pl.BlockSpec(memory_space=pltpu.MemorySpace.SMEM)

    # Cost of the pallas_call itself (the wrapper relayout is a separate XLA op
    # that XLA already accounts for).
    cost = pl.CostEstimate(
        flops=2 * n_pad * (2 * HIDDEN + HIDDEN * HIDDEN + HIDDEN),
        transcendentals=0,
        bytes_accessed=n_pad * (2 + 1) * 4
        + 4 * (w1.size + b1.size + w2.size + b2.size + w3.size + b3.size),
    )

    out_t = pl.pallas_call(
        mlp_kernel,
        out_shape=jax.ShapeDtypeStruct((n_sub, LANES), jnp.float32),
        grid=grid,
        in_specs=[
            smem, smem, smem, smem, smem, smem,                       # weights
            pl.BlockSpec((2, s_block, LANES), lambda i: (0, i, 0)),   # x block
        ],
        out_specs=pl.BlockSpec((s_block, LANES), lambda i: (i, 0)),   # lane-dense
        compiler_params=pltpu.CompilerParams(
            dimension_semantics=("parallel",),   # shard batch blocks across TCs
        ),
        cost_estimate=cost,
    )(w1, b1, w2, b2, w3, b3, x_t)

    # Per-step VMEM: (2,s_block,128)+(s_block,128) f32, double-buffered -> a few
    # hundred KiB, well inside v7x's 64 MiB; no vmem_limit_bytes override needed.
    return out_t.reshape(n_pad)[:N].reshape(N, 1)


def init_params(key):
    """nn.Linear-style init; weights stored as (in, out) so we compute x @ W + b."""
    k1, k2, k3, k4, k5, k6 = jax.random.split(key, 6)

    def uniform(k, shape, fan_in):
        bound = 1.0 / jnp.sqrt(jnp.float32(fan_in))
        return jax.random.uniform(k, shape, jnp.float32, -bound, bound)

    w1 = uniform(k1, (2, HIDDEN), 2)        # layer_1: in=2,  out=10
    b1 = uniform(k2, (HIDDEN,), 2)
    w2 = uniform(k3, (HIDDEN, HIDDEN), 10)  # layer_2: in=10, out=10
    b2 = uniform(k4, (HIDDEN,), 10)
    w3 = uniform(k5, (HIDDEN, 1), 10)       # layer_3: in=10, out=1
    b3 = uniform(k6, (1,), 10)
    return (w1, b1, w2, b2, w3, b3)


def reference_forward(x, params):
    w1, b1, w2, b2, w3, b3 = params
    h1 = jnp.maximum(x @ w1 + b1, 0.0)
    h2 = jnp.maximum(h1 @ w2 + b2, 0.0)
    return h2 @ w3 + b3


if __name__ == "__main__":
    key = jax.random.PRNGKey(0)
    k_x, k_p = jax.random.split(key)

    N = 777  # not a multiple of 128 -> exercises padding + tail slicing
    x = jax.random.normal(k_x, (N, 2), jnp.float32)
    params = init_params(k_p)

    fwd = jax.jit(circle_model_v2_forward)
    out = jax.block_until_ready(fwd(x, params))

    ref = reference_forward(x, params)
    assert out.shape == (N, 1)
    # Tree/dual-accumulator reduction order differs from jnp.dot; f32 still
    # agrees tightly.
    assert jnp.allclose(out, ref, atol=2e-5, rtol=1e-4)

    print("KERNEL_OK")
</pallas_src>

<mosaic_0001>
module attributes {stable_mosaic.version = 11 : i64} {
  func.func @mlp_kernel(%arg0: i32, %arg1: memref<2x10xf32, #tpu.memory_space<smem>>, %arg2: memref<10xf32, #tpu.memory_space<smem>>, %arg3: memref<10x10xf32, #tpu.memory_space<smem>>, %arg4: memref<10xf32, #tpu.memory_space<smem>>, %arg5: memref<10x1xf32, #tpu.memory_space<smem>>, %arg6: memref<1xf32, #tpu.memory_space<smem>>, %arg7: memref<2x8x128xf32, #tpu.memory_space<vmem>>, %arg8: memref<8x128xf32, #tpu.memory_space<vmem>>) attributes {dimension_semantics = [#tpu.dimension_semantics<parallel>], iteration_bounds = array<i64: 1>, scalar_prefetch = 0 : i64, scratch_operands = 0 : i64, tpu.core_type = #tpu.core_type<tc>, window_params = [{transform_indices = @transform_0, window_bounds = array<i64: 2, 10>}, {transform_indices = @transform_1, window_bounds = array<i64: 10>}, {transform_indices = @transform_2, window_bounds = array<i64: 10, 10>}, {transform_indices = @transform_3, window_bounds = array<i64: 10>}, {transform_indices = @transform_4, window_bounds = array<i64: 10, 1>}, {transform_indices = @transform_5, window_bounds = array<i64: 1>}, {transform_indices = @transform_6, window_bounds = array<i64: 2, 8, 128>}, {transform_indices = @transform_7, window_bounds = array<i64: 8, 128>}]} {
    %c0 = arith.constant 0 : index
    %c0_0 = arith.constant 0 : index
    %0 = memref.load %arg1[%c0, %c0_0] : memref<2x10xf32, #tpu.memory_space<smem>>
    %c0_1 = arith.constant 0 : index
    %c1 = arith.constant 1 : index
    %1 = memref.load %arg1[%c0_1, %c1] : memref<2x10xf32, #tpu.memory_space<smem>>
    %c0_2 = arith.constant 0 : index
    %c2 = arith.constant 2 : index
    %2 = memref.load %arg1[%c0_2, %c2] : memref<2x10xf32, #tpu.memory_space<smem>>
    %c0_3 = arith.constant 0 : index
    %c3 = arith.constant 3 : index
    %3 = memref.load %arg1[%c0_3, %c3] : memref<2x10xf32, #tpu.memory_space<smem>>
    %c0_4 = arith.constant 0 : index
    %c4 = arith.constant 4 : index
    %4 = memref.load %arg1[%c0_4, %c4] : memref<2x10xf32, #tpu.memory_space<smem>>
    %c0_5 = arith.constant 0 : index
    %c5 = arith.constant 5 : index
    %5 = memref.load %arg1[%c0_5, %c5] : memref<2x10xf32, #tpu.memory_space<smem>>
    %c0_6 = arith.constant 0 : index
    %c6 = arith.constant 6 : index
    %6 = memref.load %arg1[%c0_6, %c6] : memref<2x10xf32, #tpu.memory_space<smem>>
    %c0_7 = arith.constant 0 : index
    %c7 = arith.constant 7 : index
    %7 = memref.load %arg1[%c0_7, %c7] : memref<2x10xf32, #tpu.memory_space<smem>>
    %c0_8 = arith.constant 0 : index
    %c8 = arith.constant 8 : index
    %8 = memref.load %arg1[%c0_8, %c8] : memref<2x10xf32, #tpu.memory_space<smem>>
    %c0_9 = arith.constant 0 : index
    %c9 = arith.constant 9 : index
    %9 = memref.load %arg1[%c0_9, %c9] : memref<2x10xf32, #tpu.memory_space<smem>>
    %c1_10 = arith.constant 1 : index
    %c0_11 = arith.constant 0 : index
    %10 = memref.load %arg1[%c1_10, %c0_11] : memref<2x10xf32, #tpu.memory_space<smem>>
    %c1_12 = arith.constant 1 : index
    %c1_13 = arith.constant 1 : index
    %11 = memref.load %arg1[%c1_12, %c1_13] : memref<2x10xf32, #tpu.memory_space<smem>>
    %c1_14 = arith.constant 1 : index
    %c2_15 = arith.constant 2 : index
    %12 = memref.load %arg1[%c1_14, %c2_15] : memref<2x10xf32, #tpu.memory_space<smem>>
    %c1_16 = arith.constant 1 : index
    %c3_17 = arith.constant 3 : index
    %13 = memref.load %arg1[%c1_16, %c3_17] : memref<2x10xf32, #tpu.memory_space<smem>>
    %c1_18 = arith.constant 1 : index
    %c4_19 = arith.constant 4 : index
    %14 = memref.load %arg1[%c1_18, %c4_19] : memref<2x10xf32, #tpu.memory_space<smem>>
    %c1_20 = arith.constant 1 : index
    %c5_21 = arith.constant 5 : index
    %15 = memref.load %arg1[%c1_20, %c5_21] : memref<2x10xf32, #tpu.memory_space<smem>>
    %c1_22 = arith.constant 1 : index
    %c6_23 = arith.constant 6 : index
    %16 = memref.load %arg1[%c1_22, %c6_23] : memref<2x10xf32, #tpu.memory_space<smem>>
    %c1_24 = arith.constant 1 : index
    %c7_25 = arith.constant 7 : index
    %17 = memref.load %arg1[%c1_24, %c7_25] : memref<2x10xf32, #tpu.memory_space<smem>>
    %c1_26 = arith.constant 1 : index
    %c8_27 = arith.constant 8 : index
    %18 = memref.load %arg1[%c1_26, %c8_27] : memref<2x10xf32, #tpu.memory_space<smem>>
    %c1_28 = arith.constant 1 : index
    %c9_29 = arith.constant 9 : index
    %19 = memref.load %arg1[%c1_28, %c9_29] : memref<2x10xf32, #tpu.memory_space<smem>>
    %c0_30 = arith.constant 0 : index
    %20 = memref.load %arg2[%c0_30] : memref<10xf32, #tpu.memory_space<smem>>
    %c1_31 = arith.constant 1 : index
    %21 = memref.load %arg2[%c1_31] : memref<10xf32, #tpu.memory_space<smem>>
    %c2_32 = arith.constant 2 : index
    %22 = memref.load %arg2[%c2_32] : memref<10xf32, #tpu.memory_space<smem>>
    %c3_33 = arith.constant 3 : index
    %23 = memref.load %arg2[%c3_33] : memref<10xf32, #tpu.memory_space<smem>>
    %c4_34 = arith.constant 4 : index
    %24 = memref.load %arg2[%c4_34] : memref<10xf32, #tpu.memory_space<smem>>
    %c5_35 = arith.constant 5 : index
    %25 = memref.load %arg2[%c5_35] : memref<10xf32, #tpu.memory_space<smem>>
    %c6_36 = arith.constant 6 : index
    %26 = memref.load %arg2[%c6_36] : memref<10xf32, #tpu.memory_space<smem>>
    %c7_37 = arith.constant 7 : index
    %27 = memref.load %arg2[%c7_37] : memref<10xf32, #tpu.memory_space<smem>>
    %c8_38 = arith.constant 8 : index
    %28 = memref.load %arg2[%c8_38] : memref<10xf32, #tpu.memory_space<smem>>
    %c9_39 = arith.constant 9 : index
    %29 = memref.load %arg2[%c9_39] : memref<10xf32, #tpu.memory_space<smem>>
    %c0_40 = arith.constant 0 : index
    %c0_41 = arith.constant 0 : index
    %30 = memref.load %arg3[%c0_40, %c0_41] : memref<10x10xf32, #tpu.memory_space<smem>>
    %c0_42 = arith.constant 0 : index
    %c1_43 = arith.constant 1 : index
    %31 = memref.load %arg3[%c0_42, %c1_43] : memref<10x10xf32, #tpu.memory_space<smem>>
    %c0_44 = arith.constant 0 : index
    %c2_45 = arith.constant 2 : index
    %32 = memref.load %arg3[%c0_44, %c2_45] : memref<10x10xf32, #tpu.memory_space<smem>>
    %c0_46 = arith.constant 0 : index
    %c3_47 = arith.constant 3 : index
    %33 = memref.load %arg3[%c0_46, %c3_47] : memref<10x10xf32, #tpu.memory_space<smem>>
    %c0_48 = arith.constant 0 : index
    %c4_49 = arith.constant 4 : index
    %34 = memref.load %arg3[%c0_48, %c4_49] : memref<10x10xf32, #tpu.memory_space<smem>>
    %c0_50 = arith.constant 0 : index
    %c5_51 = arith.constant 5 : index
    %35 = memref.load %arg3[%c0_50, %c5_51] : memref<10x10xf32, #tpu.memory_space<smem>>
    %c0_52 = arith.constant 0 : index
    %c6_53 = arith.constant 6 : index
    %36 = memref.load %arg3[%c0_52, %c6_53] : memref<10x10xf32, #tpu.memory_space<smem>>
    %c0_54 = arith.constant 0 : index
    %c7_55 = arith.constant 7 : index
    %37 = memref.load %arg3[%c0_54, %c7_55] : memref<10x10xf32, #tpu.memory_space<smem>>
    %c0_56 = arith.constant 0 : index
    %c8_57 = arith.constant 8 : index
    %38 = memref.load %arg3[%c0_56, %c8_57] : memref<10x10xf32, #tpu.memory_space<smem>>
    %c0_58 = arith.constant 0 : index
    %c9_59 = arith.constant 9 : index
    %39 = memref.load %arg3[%c0_58, %c9_59] : memref<10x10xf32, #tpu.memory_space<smem>>
    %c1_60 = arith.constant 1 : index
    %c0_61 = arith.constant 0 : index
    %40 = memref.load %arg3[%c1_60, %c0_61] : memref<10x10xf32, #tpu.memory_space<smem>>
    %c1_62 = arith.constant 1 : index
    %c1_63 = arith.constant 1 : index
    %41 = memref.load %arg3[%c1_62, %c1_63] : memref<10x10xf32, #tpu.memory_space<smem>>
    %c1_64 = arith.constant 1 : index
    %c2_65 = arith.constant 2 : index
    %42 = memref.load %arg3[%c1_64, %c2_65] : memref<10x10xf32, #tpu.memory_space<smem>>
    %c1_66 = arith.constant 1 : index
    %c3_67 = arith.constant 3 : index
    %43 = memref.load %arg3[%c1_66, %c3_67] : memref<10x10xf32, #tpu.memory_space<smem>>
    %c1_68 = arith.constant 1 : index
    %c4_69 = arith.constant 4 : index
    %44 = memref.load %arg3[%c1_68, %c4_69] : memref<10x10xf32, #tpu.memory_space<smem>>
    %c1_70 = arith.constant 1 : index
    %c5_71 = arith.constant 5 : index
    %45 = memref.load %arg3[%c1_70, %c5_71] : memref<10x10xf32, #tpu.memory_space<smem>>
    %c1_72 = arith.constant 1 : index
    %c6_73 = arith.constant 6 : index
    %46 = memref.load %arg3[%c1_72, %c6_73] : memref<10x10xf32, #tpu.memory_space<smem>>
    %c1_74 = arith.constant 1 : index
    %c7_75 = arith.constant 7 : index
    %47 = memref.load %arg3[%c1_74, %c7_75] : memref<10x10xf32, #tpu.memory_space<smem>>
    %c1_76 = arith.constant 1 : index
    %c8_77 = arith.constant 8 : index
    %48 = memref.load %arg3[%c1_76, %c8_77] : memref<10x10xf32, #tpu.memory_space<smem>>
    %c1_78 = arith.constant 1 : index
    %c9_79 = arith.constant 9 : index
    %49 = memref.load %arg3[%c1_78, %c9_79] : memref<10x10xf32, #tpu.memory_space<smem>>
    %c2_80 = arith.constant 2 : index
    %c0_81 = arith.constant 0 : index
    %50 = memref.load %arg3[%c2_80, %c0_81] : memref<10x10xf32, #tpu.memory_space<smem>>
    %c2_82 = arith.constant 2 : index
    %c1_83 = arith.constant 1 : index
    %51 = memref.load %arg3[%c2_82, %c1_83] : memref<10x10xf32, #tpu.memory_space<smem>>
    %c2_84 = arith.constant 2 : index
    %c2_85 = arith.constant 2 : index
    %52 = memref.load %arg3[%c2_84, %c2_85] : memref<10x10xf32, #tpu.memory_space<smem>>
    %c2_86 = arith.constant 2 : index
    %c3_87 = arith.constant 3 : index
    %53 = memref.load %arg3[%c2_86, %c3_87] : memref<10x10xf32, #tpu.memory_space<smem>>
    %c2_88 = arith.constant 2 : index
    %c4_89 = arith.constant 4 : index
    %54 = memref.load %arg3[%c2_88, %c4_89] : memref<10x10xf32, #tpu.memory_space<smem>>
    %c2_90 = arith.constant 2 : index
    %c5_91 = arith.constant 5 : index
    %55 = memref.load %arg3[%c2_90, %c5_91] : memref<10x10xf32, #tpu.memory_space<smem>>
    %c2_92 = arith.constant 2 : index
    %c6_93 = arith.constant 6 : index
    %56 = memref.load %arg3[%c2_92, %c6_93] : memref<10x10xf32, #tpu.memory_space<smem>>
    %c2_94 = arith.constant 2 : index
    %c7_95 = arith.constant 7 : index
    %57 = memref.load %arg3[%c2_94, %c7_95] : memref<10x10xf32, #tpu.memory_space<smem>>
    %c2_96 = arith.constant 2 : index
    %c8_97 = arith.constant 8 : index
    %58 = memref.load %arg3[%c2_96, %c8_97] : memref<10x10xf32, #tpu.memory_space<smem>>
    %c2_98 = arith.constant 2 : index
    %c9_99 = arith.constant 9 : index
    %59 = memref.load %arg3[%c2_98, %c9_99] : memref<10x10xf32, #tpu.memory_space<smem>>
    %c3_100 = arith.constant 3 : index
    %c0_101 = arith.constant 0 : index
    %60 = memref.load %arg3[%c3_100, %c0_101] : memref<10x10xf32, #tpu.memory_space<smem>>
    %c3_102 = arith.constant 3 : index
    %c1_103 = arith.constant 1 : index
    %61 = memref.load %arg3[%c3_102, %c1_103] : memref<10x10xf32, #tpu.memory_space<smem>>
    %c3_104 = arith.constant 3 : index
    %c2_105 = arith.constant 2 : index
    %62 = memref.load %arg3[%c3_104, %c2_105] : memref<10x10xf32, #tpu.memory_space<smem>>
    %c3_106 = arith.constant 3 : index
    %c3_107 = arith.constant 3 : index
    %63 = memref.load %arg3[%c3_106, %c3_107] : memref<10x10xf32, #tpu.memory_space<smem>>
    %c3_108 = arith.constant 3 : index
    %c4_109 = arith.constant 4 : index
    %64 = memref.load %arg3[%c3_108, %c4_109] : memref<10x10xf32, #tpu.memory_space<smem>>
    %c3_110 = arith.constant 3 : index
    %c5_111 = arith.constant 5 : index
    %65 = memref.load %arg3[%c3_110, %c5_111] : memref<10x10xf32, #tpu.memory_space<smem>>
    %c3_112 = arith.constant 3 : index
    %c6_113 = arith.constant 6 : index
    %66 = memref.load %arg3[%c3_112, %c6_113] : memref<10x10xf32, #tpu.memory_space<smem>>
    %c3_114 = arith.constant 3 : index
    %c7_115 = arith.constant 7 : index
    %67 = memref.load %arg3[%c3_114, %c7_115] : memref<10x10xf32, #tpu.memory_space<smem>>
    %c3_116 = arith.constant 3 : index
    %c8_117 = arith.constant 8 : index
    %68 = memref.load %arg3[%c3_116, %c8_117] : memref<10x10xf32, #tpu.memory_space<smem>>
    %c3_118 = arith.constant 3 : index
    %c9_119 = arith.constant 9 : index
    %69 = memref.load %arg3[%c3_118, %c9_119] : memref<10x10xf32, #tpu.memory_space<smem>>
    %c4_120 = arith.constant 4 : index
    %c0_121 = arith.constant 0 : index
    %70 = memref.load %arg3[%c4_120, %c0_121] : memref<10x10xf32, #tpu.memory_space<smem>>
    %c4_122 = arith.constant 4 : index
    %c1_123 = arith.constant 1 : index
    %71 = memref.load %arg3[%c4_122, %c1_123] : memref<10x10xf32, #tpu.memory_space<smem>>
    %c4_124 = arith.constant 4 : index
    %c2_125 = arith.constant 2 : index
    %72 = memref.load %arg3[%c4_124, %c2_125] : memref<10x10xf32, #tpu.memory_space<smem>>
    %c4_126 = arith.constant 4 : index
    %c3_127 = arith.constant 3 : index
    %73 = memref.load %arg3[%c4_126, %c3_127] : memref<10x10xf32, #tpu.memory_space<smem>>
    %c4_128 = arith.constant 4 : index
    %c4_129 = arith.constant 4 : index
    %74 = memref.load %arg3[%c4_128, %c4_129] : memref<10x10xf32, #tpu.memory_space<smem>>
    %c4_130 = arith.constant 4 : index
    %c5_131 = arith.constant 5 : index
    %75 = memref.load %arg3[%c4_130, %c5_131] : memref<10x10xf32, #tpu.memory_space<smem>>
    %c4_132 = arith.constant 4 : index
    %c6_133 = arith.constant 6 : index
    %76 = memref.load %arg3[%c4_132, %c6_133] : memref<10x10xf32, #tpu.memory_space<smem>>
    %c4_134 = arith.constant 4 : index
    %c7_135 = arith.constant 7 : index
    %77 = memref.load %arg3[%c4_134, %c7_135] : memref<10x10xf32, #tpu.memory_space<smem>>
    %c4_136 = arith.constant 4 : index
    %c8_137 = arith.constant 8 : index
    %78 = memref.load %arg3[%c4_136, %c8_137] : memref<10x10xf32, #tpu.memory_space<smem>>
    %c4_138 = arith.constant 4 : index
    %c9_139 = arith.constant 9 : index
    %79 = memref.load %arg3[%c4_138, %c9_139] : memref<10x10xf32, #tpu.memory_space<smem>>
    %c5_140 = arith.constant 5 : index
    %c0_141 = arith.constant 0 : index
    %80 = memref.load %arg3[%c5_140, %c0_141] : memref<10x10xf32, #tpu.memory_space<smem>>
    %c5_142 = arith.constant 5 : index
    %c1_143 = arith.constant 1 : index
    %81 = memref.load %arg3[%c5_142, %c1_143] : memref<10x10xf32, #tpu.memory_space<smem>>
    %c5_144 = arith.constant 5 : index
    %c2_145 = arith.constant 2 : index
    %82 = memref.load %arg3[%c5_144, %c2_145] : memref<10x10xf32, #tpu.memory_space<smem>>
    %c5_146 = arith.constant 5 : index
    %c3_147 = arith.constant 3 : index
    %83 = memref.load %arg3[%c5_146, %c3_147] : memref<10x10xf32, #tpu.memory_space<smem>>
    %c5_148 = arith.constant 5 : index
    %c4_149 = arith.constant 4 : index
    %84 = memref.load %arg3[%c5_148, %c4_149] : memref<10x10xf32, #tpu.memory_space<smem>>
    %c5_150 = arith.constant 5 : index
    %c5_151 = arith.constant 5 : index
    %85 = memref.load %arg3[%c5_150, %c5_151] : memref<10x10xf32, #tpu.memory_space<smem>>
    %c5_152 = arith.constant 5 : index
    %c6_153 = arith.constant 6 : index
    %86 = memref.load %arg3[%c5_152, %c6_153] : memref<10x10xf32, #tpu.memory_space<smem>>
    %c5_154 = arith.constant 5 : index
    %c7_155 = arith.constant 7 : index
    %87 = memref.load %arg3[%c5_154, %c7_155] : memref<10x10xf32, #tpu.memory_space<smem>>
    %c5_156 = arith.constant 5 : index
    %c8_157 = arith.constant 8 : index
    %88 = memref.load %arg3[%c5_156, %c8_157] : memref<10x10xf32, #tpu.memory_space<smem>>
    %c5_158 = arith.constant 5 : index
    %c9_159 = arith.constant 9 : index
    %89 = memref.load %arg3[%c5_158, %c9_159] : memref<10x10xf32, #tpu.memory_space<smem>>
    %c6_160 = arith.constant 6 : index
    %c0_161 = arith.constant 0 : index
    %90 = memref.load %arg3[%c6_160, %c0_161] : memref<10x10xf32, #tpu.memory_space<smem>>
    %c6_162 = arith.constant 6 : index
    %c1_163 = arith.constant 1 : index
    %91 = memref.load %arg3[%c6_162, %c1_163] : memref<10x10xf32, #tpu.memory_space<smem>>
    %c6_164 = arith.constant 6 : index
    %c2_165 = arith.constant 2 : index
    %92 = memref.load %arg3[%c6_164, %c2_165] : memref<10x10xf32, #tpu.memory_space<smem>>
    %c6_166 = arith.constant 6 : index
    %c3_167 = arith.constant 3 : index
    %93 = memref.load %arg3[%c6_166, %c3_167] : memref<10x10xf32, #tpu.memory_space<smem>>
    %c6_168 = arith.constant 6 : index
    %c4_169 = arith.constant 4 : index
    %94 = memref.load %arg3[%c6_168, %c4_169] : memref<10x10xf32, #tpu.memory_space<smem>>
    %c6_170 = arith.constant 6 : index
    %c5_171 = arith.constant 5 : index
    %95 = memref.load %arg3[%c6_170, %c5_171] : memref<10x10xf32, #tpu.memory_space<smem>>
    %c6_172 = arith.constant 6 : index
    %c6_173 = arith.constant 6 : index
    %96 = memref.load %arg3[%c6_172, %c6_173] : memref<10x10xf32, #tpu.memory_space<smem>>
    %c6_174 = arith.constant 6 : index
    %c7_175 = arith.constant 7 : index
    %97 = memref.load %arg3[%c6_174, %c7_175] : memref<10x10xf32, #tpu.memory_space<smem>>
    %c6_176 = arith.constant 6 : index
    %c8_177 = arith.constant 8 : index
    %98 = memref.load %arg3[%c6_176, %c8_177] : memref<10x10xf32, #tpu.memory_space<smem>>
    %c6_178 = arith.constant 6 : index
    %c9_179 = arith.constant 9 : index
    %99 = memref.load %arg3[%c6_178, %c9_179] : memref<10x10xf32, #tpu.memory_space<smem>>
    %c7_180 = arith.constant 7 : index
    %c0_181 = arith.constant 0 : index
    %100 = memref.load %arg3[%c7_180, %c0_181] : memref<10x10xf32, #tpu.memory_space<smem>>
    %c7_182 = arith.constant 7 : index
    %c1_183 = arith.constant 1 : index
    %101 = memref.load %arg3[%c7_182, %c1_183] : memref<10x10xf32, #tpu.memory_space<smem>>
    %c7_184 = arith.constant 7 : index
    %c2_185 = arith.constant 2 : index
    %102 = memref.load %arg3[%c7_184, %c2_185] : memref<10x10xf32, #tpu.memory_space<smem>>
    %c7_186 = arith.constant 7 : index
    %c3_187 = arith.constant 3 : index
    %103 = memref.load %arg3[%c7_186, %c3_187] : memref<10x10xf32, #tpu.memory_space<smem>>
    %c7_188 = arith.constant 7 : index
    %c4_189 = arith.constant 4 : index
    %104 = memref.load %arg3[%c7_188, %c4_189] : memref<10x10xf32, #tpu.memory_space<smem>>
    %c7_190 = arith.constant 7 : index
    %c5_191 = arith.constant 5 : index
    %105 = memref.load %arg3[%c7_190, %c5_191] : memref<10x10xf32, #tpu.memory_space<smem>>
    %c7_192 = arith.constant 7 : index
    %c6_193 = arith.constant 6 : index
    %106 = memref.load %arg3[%c7_192, %c6_193] : memref<10x10xf32, #tpu.memory_space<smem>>
    %c7_194 = arith.constant 7 : index
    %c7_195 = arith.constant 7 : index
    %107 = memref.load %arg3[%c7_194, %c7_195] : memref<10x10xf32, #tpu.memory_space<smem>>
    %c7_196 = arith.constant 7 : index
    %c8_197 = arith.constant 8 : index
    %108 = memref.load %arg3[%c7_196, %c8_197] : memref<10x10xf32, #tpu.memory_space<smem>>
    %c7_198 = arith.constant 7 : index
    %c9_199 = arith.constant 9 : index
    %109 = memref.load %arg3[%c7_198, %c9_199] : memref<10x10xf32, #tpu.memory_space<smem>>
    %c8_200 = arith.constant 8 : index
    %c0_201 = arith.constant 0 : index
    %110 = memref.load %arg3[%c8_200, %c0_201] : memref<10x10xf32, #tpu.memory_space<smem>>
    %c8_202 = arith.constant 8 : index
    %c1_203 = arith.constant 1 : index
    %111 = memref.load %arg3[%c8_202, %c1_203] : memref<10x10xf32, #tpu.memory_space<smem>>
    %c8_204 = arith.constant 8 : index
    %c2_205 = arith.constant 2 : index
    %112 = memref.load %arg3[%c8_204, %c2_205] : memref<10x10xf32, #tpu.memory_space<smem>>
    %c8_206 = arith.constant 8 : index
    %c3_207 = arith.constant 3 : index
    %113 = memref.load %arg3[%c8_206, %c3_207] : memref<10x10xf32, #tpu.memory_space<smem>>
    %c8_208 = arith.constant 8 : index
    %c4_209 = arith.constant 4 : index
    %114 = memref.load %arg3[%c8_208, %c4_209] : memref<10x10xf32, #tpu.memory_space<smem>>
    %c8_210 = arith.constant 8 : index
    %c5_211 = arith.constant 5 : index
    %115 = memref.load %arg3[%c8_210, %c5_211] : memref<10x10xf32, #tpu.memory_space<smem>>
    %c8_212 = arith.constant 8 : index
    %c6_213 = arith.constant 6 : index
    %116 = memref.load %arg3[%c8_212, %c6_213] : memref<10x10xf32, #tpu.memory_space<smem>>
    %c8_214 = arith.constant 8 : index
    %c7_215 = arith.constant 7 : index
    %117 = memref.load %arg3[%c8_214, %c7_215] : memref<10x10xf32, #tpu.memory_space<smem>>
    %c8_216 = arith.constant 8 : index
    %c8_217 = arith.constant 8 : index
    %118 = memref.load %arg3[%c8_216, %c8_217] : memref<10x10xf32, #tpu.memory_space<smem>>
    %c8_218 = arith.constant 8 : index
    %c9_219 = arith.constant 9 : index
    %119 = memref.load %arg3[%c8_218, %c9_219] : memref<10x10xf32, #tpu.memory_space<smem>>
    %c9_220 = arith.constant 9 : index
    %c0_221 = arith.constant 0 : index
    %120 = memref.load %arg3[%c9_220, %c0_221] : memref<10x10xf32, #tpu.memory_space<smem>>
    %c9_222 = arith.constant 9 : index
    %c1_223 = arith.constant 1 : index
    %121 = memref.load %arg3[%c9_222, %c1_223] : memref<10x10xf32, #tpu.memory_space<smem>>
    %c9_224 = arith.constant 9 : index
    %c2_225 = arith.constant 2 : index
    %122 = memref.load %arg3[%c9_224, %c2_225] : memref<10x10xf32, #tpu.memory_space<smem>>
    %c9_226 = arith.constant 9 : index
    %c3_227 = arith.constant 3 : index
    %123 = memref.load %arg3[%c9_226, %c3_227] : memref<10x10xf32, #tpu.memory_space<smem>>
    %c9_228 = arith.constant 9 : index
    %c4_229 = arith.constant 4 : index
    %124 = memref.load %arg3[%c9_228, %c4_229] : memref<10x10xf32, #tpu.memory_space<smem>>
    %c9_230 = arith.constant 9 : index
    %c5_231 = arith.constant 5 : index
    %125 = memref.load %arg3[%c9_230, %c5_231] : memref<10x10xf32, #tpu.memory_space<smem>>
    %c9_232 = arith.constant 9 : index
    %c6_233 = arith.constant 6 : index
    %126 = memref.load %arg3[%c9_232, %c6_233] : memref<10x10xf32, #tpu.memory_space<smem>>
    %c9_234 = arith.constant 9 : index
    %c7_235 = arith.constant 7 : index
    %127 = memref.load %arg3[%c9_234, %c7_235] : memref<10x10xf32, #tpu.memory_space<smem>>
    %c9_236 = arith.constant 9 : index
    %c8_237 = arith.constant 8 : index
    %128 = memref.load %arg3[%c9_236, %c8_237] : memref<10x10xf32, #tpu.memory_space<smem>>
    %c9_238 = arith.constant 9 : index
    %c9_239 = arith.constant 9 : index
    %129 = memref.load %arg3[%c9_238, %c9_239] : memref<10x10xf32, #tpu.memory_space<smem>>
    %c0_240 = arith.constant 0 : index
    %130 = memref.load %arg4[%c0_240] : memref<10xf32, #tpu.memory_space<smem>>
    %c1_241 = arith.constant 1 : index
    %131 = memref.load %arg4[%c1_241] : memref<10xf32, #tpu.memory_space<smem>>
    %c2_242 = arith.constant 2 : index
    %132 = memref.load %arg4[%c2_242] : memref<10xf32, #tpu.memory_space<smem>>
    %c3_243 = arith.constant 3 : index
    %133 = memref.load %arg4[%c3_243] : memref<10xf32, #tpu.memory_space<smem>>
    %c4_244 = arith.constant 4 : index
    %134 = memref.load %arg4[%c4_244] : memref<10xf32, #tpu.memory_space<smem>>
    %c5_245 = arith.constant 5 : index
    %135 = memref.load %arg4[%c5_245] : memref<10xf32, #tpu.memory_space<smem>>
    %c6_246 = arith.constant 6 : index
    %136 = memref.load %arg4[%c6_246] : memref<10xf32, #tpu.memory_space<smem>>
    %c7_247 = arith.constant 7 : index
    %137 = memref.load %arg4[%c7_247] : memref<10xf32, #tpu.memory_space<smem>>
    %c8_248 = arith.constant 8 : index
    %138 = memref.load %arg4[%c8_248] : memref<10xf32, #tpu.memory_space<smem>>
    %c9_249 = arith.constant 9 : index
    %139 = memref.load %arg4[%c9_249] : memref<10xf32, #tpu.memory_space<smem>>
    %c0_250 = arith.constant 0 : index
    %c0_251 = arith.constant 0 : index
    %140 = memref.load %arg5[%c0_250, %c0_251] : memref<10x1xf32, #tpu.memory_space<smem>>
    %c1_252 = arith.constant 1 : index
    %c0_253 = arith.constant 0 : index
    %141 = memref.load %arg5[%c1_252, %c0_253] : memref<10x1xf32, #tpu.memory_space<smem>>
    %c2_254 = arith.constant 2 : index
    %c0_255 = arith.constant 0 : index
    %142 = memref.load %arg5[%c2_254, %c0_255] : memref<10x1xf32, #tpu.memory_space<smem>>
    %c3_256 = arith.constant 3 : index
    %c0_257 = arith.constant 0 : index
    %143 = memref.load %arg5[%c3_256, %c0_257] : memref<10x1xf32, #tpu.memory_space<smem>>
    %c4_258 = arith.constant 4 : index
    %c0_259 = arith.constant 0 : index
    %144 = memref.load %arg5[%c4_258, %c0_259] : memref<10x1xf32, #tpu.memory_space<smem>>
    %c5_260 = arith.constant 5 : index
    %c0_261 = arith.constant 0 : index
    %145 = memref.load %arg5[%c5_260, %c0_261] : memref<10x1xf32, #tpu.memory_space<smem>>
    %c6_262 = arith.constant 6 : index
    %c0_263 = arith.constant 0 : index
    %146 = memref.load %arg5[%c6_262, %c0_263] : memref<10x1xf32, #tpu.memory_space<smem>>
    %c7_264 = arith.constant 7 : index
    %c0_265 = arith.constant 0 : index
    %147 = memref.load %arg5[%c7_264, %c0_265] : memref<10x1xf32, #tpu.memory_space<smem>>
    %c8_266 = arith.constant 8 : index
    %c0_267 = arith.constant 0 : index
    %148 = memref.load %arg5[%c8_266, %c0_267] : memref<10x1xf32, #tpu.memory_space<smem>>
    %c9_268 = arith.constant 9 : index
    %c0_269 = arith.constant 0 : index
    %149 = memref.load %arg5[%c9_268, %c0_269] : memref<10x1xf32, #tpu.memory_space<smem>>
    %c0_270 = arith.constant 0 : index
    %150 = memref.load %arg6[%c0_270] : memref<1xf32, #tpu.memory_space<smem>>
    %c0_i32 = arith.constant 0 : i32
    %c8_i32 = arith.constant 8 : i32
    %151 = arith.muli %c0_i32, %c8_i32 : i32
    %152 = tpu.assume_multiple %151, 8 : i32
    %c0_271 = arith.constant 0 : index
    %153 = arith.index_cast %152 : i32 to index
    %c0_272 = arith.constant 0 : index
    %154 = vector.load %arg7[%c0_271, %153, %c0_272] : memref<2x8x128xf32, #tpu.memory_space<vmem>>, vector<1x8x128xf32>
    %155 = vector.shape_cast %154 : vector<1x8x128xf32> to vector<8x128xf32>
    %c1_273 = arith.constant 1 : index
    %156 = arith.index_cast %152 : i32 to index
    %c0_274 = arith.constant 0 : index
    %157 = vector.load %arg7[%c1_273, %156, %c0_274] : memref<2x8x128xf32, #tpu.memory_space<vmem>>, vector<1x8x128xf32>
    %158 = vector.shape_cast %157 : vector<1x8x128xf32> to vector<8x128xf32>
    %159 = vector.broadcast %0 : f32 to vector<8x128xf32>
    %160 = arith.mulf %155, %159 : vector<8x128xf32>
    %161 = vector.broadcast %10 : f32 to vector<8x128xf32>
    %162 = arith.mulf %158, %161 : vector<8x128xf32>
    %163 = arith.addf %160, %162 : vector<8x128xf32>
    %164 = vector.broadcast %20 : f32 to vector<8x128xf32>
    %165 = arith.addf %163, %164 : vector<8x128xf32>
    %cst = arith.constant 0.000000e+00 : f32
    %166 = vector.broadcast %cst : f32 to vector<8x128xf32>
    %167 = arith.maximumf %165, %166 : vector<8x128xf32>
    %168 = vector.broadcast %1 : f32 to vector<8x128xf32>
    %169 = arith.mulf %155, %168 : vector<8x128xf32>
    %170 = vector.broadcast %11 : f32 to vector<8x128xf32>
    %171 = arith.mulf %158, %170 : vector<8x128xf32>
    %172 = arith.addf %169, %171 : vector<8x128xf32>
    %173 = vector.broadcast %21 : f32 to vector<8x128xf32>
    %174 = arith.addf %172, %173 : vector<8x128xf32>
    %cst_275 = arith.constant 0.000000e+00 : f32
    %175 = vector.broadcast %cst_275 : f32 to vector<8x128xf32>
    %176 = arith.maximumf %174, %175 : vector<8x128xf32>
    %177 = vector.broadcast %2 : f32 to vector<8x128xf32>
    %178 = arith.mulf %155, %177 : vector<8x128xf32>
    %179 = vector.broadcast %12 : f32 to vector<8x128xf32>
    %180 = arith.mulf %158, %179 : vector<8x128xf32>
    %181 = arith.addf %178, %180 : vector<8x128xf32>
    %182 = vector.broadcast %22 : f32 to vector<8x128xf32>
    %183 = arith.addf %181, %182 : vector<8x128xf32>
    %cst_276 = arith.constant 0.000000e+00 : f32
    %184 = vector.broadcast %cst_276 : f32 to vector<8x128xf32>
    %185 = arith.maximumf %183, %184 : vector<8x128xf32>
    %186 = vector.broadcast %3 : f32 to vector<8x128xf32>
    %187 = arith.mulf %155, %186 : vector<8x128xf32>
    %188 = vector.broadcast %13 : f32 to vector<8x128xf32>
    %189 = arith.mulf %158, %188 : vector<8x128xf32>
    %190 = arith.addf %187, %189 : vector<8x128xf32>
    %191 = vector.broadcast %23 : f32 to vector<8x128xf32>
    %192 = arith.addf %190, %191 : vector<8x128xf32>
    %cst_277 = arith.constant 0.000000e+00 : f32
    %193 = vector.broadcast %cst_277 : f32 to vector<8x128xf32>
    %194 = arith.maximumf %192, %193 : vector<8x128xf32>
    %195 = vector.broadcast %4 : f32 to vector<8x128xf32>
    %196 = arith.mulf %155, %195 : vector<8x128xf32>
    %197 = vector.broadcast %14 : f32 to vector<8x128xf32>
    %198 = arith.mulf %158, %197 : vector<8x128xf32>
    %199 = arith.addf %196, %198 : vector<8x128xf32>
    %200 = vector.broadcast %24 : f32 to vector<8x128xf32>
    %201 = arith.addf %199, %200 : vector<8x128xf32>
    %cst_278 = arith.constant 0.000000e+00 : f32
    %202 = vector.broadcast %cst_278 : f32 to vector<8x128xf32>
    %203 = arith.maximumf %201, %202 : vector<8x128xf32>
    %204 = vector.broadcast %5 : f32 to vector<8x128xf32>
    %205 = arith.mulf %155, %204 : vector<8x128xf32>
    %206 = vector.broadcast %15 : f32 to vector<8x128xf32>
    %207 = arith.mulf %158, %206 : vector<8x128xf32>
    %208 = arith.addf %205, %207 : vector<8x128xf32>
    %209 = vector.broadcast %25 : f32 to vector<8x128xf32>
    %210 = arith.addf %208, %209 : vector<8x128xf32>
    %cst_279 = arith.constant 0.000000e+00 : f32
    %211 = vector.broadcast %cst_279 : f32 to vector<8x128xf32>
    %212 = arith.maximumf %210, %211 : vector<8x128xf32>
    %213 = vector.broadcast %6 : f32 to vector<8x128xf32>
    %214 = arith.mulf %155, %213 : vector<8x128xf32>
    %215 = vector.broadcast %16 : f32 to vector<8x128xf32>
    %216 = arith.mulf %158, %215 : vector<8x128xf32>
    %217 = arith.addf %214, %216 : vector<8x128xf32>
    %218 = vector.broadcast %26 : f32 to vector<8x128xf32>
    %219 = arith.addf %217, %218 : vector<8x128xf32>
    %cst_280 = arith.constant 0.000000e+00 : f32
    %220 = vector.broadcast %cst_280 : f32 to vector<8x128xf32>
    %221 = arith.maximumf %219, %220 : vector<8x128xf32>
    %222 = vector.broadcast %7 : f32 to vector<8x128xf32>
    %223 = arith.mulf %155, %222 : vector<8x128xf32>
    %224 = vector.broadcast %17 : f32 to vector<8x128xf32>
    %225 = arith.mulf %158, %224 : vector<8x128xf32>
    %226 = arith.addf %223, %225 : vector<8x128xf32>
    %227 = vector.broadcast %27 : f32 to vector<8x128xf32>
    %228 = arith.addf %226, %227 : vector<8x128xf32>
    %cst_281 = arith.constant 0.000000e+00 : f32
    %229 = vector.broadcast %cst_281 : f32 to vector<8x128xf32>
    %230 = arith.maximumf %228, %229 : vector<8x128xf32>
    %231 = vector.broadcast %8 : f32 to vector<8x128xf32>
    %232 = arith.mulf %155, %231 : vector<8x128xf32>
    %233 = vector.broadcast %18 : f32 to vector<8x128xf32>
    %234 = arith.mulf %158, %233 : vector<8x128xf32>
    %235 = arith.addf %232, %234 : vector<8x128xf32>
    %236 = vector.broadcast %28 : f32 to vector<8x128xf32>
    %237 = arith.addf %235, %236 : vector<8x128xf32>
    %cst_282 = arith.constant 0.000000e+00 : f32
    %238 = vector.broadcast %cst_282 : f32 to vector<8x128xf32>
    %239 = arith.maximumf %237, %238 : vector<8x128xf32>
    %240 = vector.broadcast %9 : f32 to vector<8x128xf32>
    %241 = arith.mulf %155, %240 : vector<8x128xf32>
    %242 = vector.broadcast %19 : f32 to vector<8x128xf32>
    %243 = arith.mulf %158, %242 : vector<8x128xf32>
    %244 = arith.addf %241, %243 : vector<8x128xf32>
    %245 = vector.broadcast %29 : f32 to vector<8x128xf32>
    %246 = arith.addf %244, %245 : vector<8x128xf32>
    %cst_283 = arith.constant 0.000000e+00 : f32
    %247 = vector.broadcast %cst_283 : f32 to vector<8x128xf32>
    %248 = arith.maximumf %246, %247 : vector<8x128xf32>
    %249 = vector.broadcast %30 : f32 to vector<8x128xf32>
    %250 = arith.mulf %167, %249 : vector<8x128xf32>
    %251 = vector.broadcast %40 : f32 to vector<8x128xf32>
    %252 = arith.mulf %176, %251 : vector<8x128xf32>
    %253 = vector.broadcast %50 : f32 to vector<8x128xf32>
    %254 = arith.mulf %185, %253 : vector<8x128xf32>
    %255 = vector.broadcast %60 : f32 to vector<8x128xf32>
    %256 = arith.mulf %194, %255 : vector<8x128xf32>
    %257 = vector.broadcast %70 : f32 to vector<8x128xf32>
    %258 = arith.mulf %203, %257 : vector<8x128xf32>
    %259 = vector.broadcast %80 : f32 to vector<8x128xf32>
    %260 = arith.mulf %212, %259 : vector<8x128xf32>
    %261 = vector.broadcast %90 : f32 to vector<8x128xf32>
    %262 = arith.mulf %221, %261 : vector<8x128xf32>
    %263 = vector.broadcast %100 : f32 to vector<8x128xf32>
    %264 = arith.mulf %230, %263 : vector<8x128xf32>
    %265 = vector.broadcast %110 : f32 to vector<8x128xf32>
    %266 = arith.mulf %239, %265 : vector<8x128xf32>
    %267 = vector.broadcast %120 : f32 to vector<8x128xf32>
    %268 = arith.mulf %248, %267 : vector<8x128xf32>
    %269 = arith.addf %250, %252 : vector<8x128xf32>
    %270 = arith.addf %254, %256 : vector<8x128xf32>
    %271 = arith.addf %258, %260 : vector<8x128xf32>
    %272 = arith.addf %262, %264 : vector<8x128xf32>
    %273 = arith.addf %266, %268 : vector<8x128xf32>
    %274 = arith.addf %269, %270 : vector<8x128xf32>
    %275 = arith.addf %271, %272 : vector<8x128xf32>
    %276 = arith.addf %274, %275 : vector<8x128xf32>
    %277 = arith.addf %276, %273 : vector<8x128xf32>
    %278 = vector.broadcast %130 : f32 to vector<8x128xf32>
    %279 = arith.addf %277, %278 : vector<8x128xf32>
    %cst_284 = arith.constant 0.000000e+00 : f32
    %280 = vector.broadcast %cst_284 : f32 to vector<8x128xf32>
    %281 = arith.maximumf %279, %280 : vector<8x128xf32>
    %282 = vector.broadcast %140 : f32 to vector<8x128xf32>
    %283 = arith.mulf %281, %282 : vector<8x128xf32>
    %284 = vector.broadcast %31 : f32 to vector<8x128xf32>
    %285 = arith.mulf %167, %284 : vector<8x128xf32>
    %286 = vector.broadcast %41 : f32 to vector<8x128xf32>
    %287 = arith.mulf %176, %286 : vector<8x128xf32>
    %288 = vector.broadcast %51 : f32 to vector<8x128xf32>
    %289 = arith.mulf %185, %288 : vector<8x128xf32>
    %290 = vector.broadcast %61 : f32 to vector<8x128xf32>
    %291 = arith.mulf %194, %290 : vector<8x128xf32>
    %292 = vector.broadcast %71 : f32 to vector<8x128xf32>
    %293 = arith.mulf %203, %292 : vector<8x128xf32>
    %294 = vector.broadcast %81 : f32 to vector<8x128xf32>
    %295 = arith.mulf %212, %294 : vector<8x128xf32>
    %296 = vector.broadcast %91 : f32 to vector<8x128xf32>
    %297 = arith.mulf %221, %296 : vector<8x128xf32>
    %298 = vector.broadcast %101 : f32 to vector<8x128xf32>
    %299 = arith.mulf %230, %298 : vector<8x128xf32>
    %300 = vector.broadcast %111 : f32 to vector<8x128xf32>
    %301 = arith.mulf %239, %300 : vector<8x128xf32>
    %302 = vector.broadcast %121 : f32 to vector<8x128xf32>
    %303 = arith.mulf %248, %302 : vector<8x128xf32>
    %304 = arith.addf %285, %287 : vector<8x128xf32>
    %305 = arith.addf %289, %291 : vector<8x128xf32>
    %306 = arith.addf %293, %295 : vector<8x128xf32>
    %307 = arith.addf %297, %299 : vector<8x128xf32>
    %308 = arith.addf %301, %303 : vector<8x128xf32>
    %309 = arith.addf %304, %305 : vector<8x128xf32>
    %310 = arith.addf %306, %307 : vector<8x128xf32>
    %311 = arith.addf %309, %310 : vector<8x128xf32>
    %312 = arith.addf %311, %308 : vector<8x128xf32>
    %313 = vector.broadcast %131 : f32 to vector<8x128xf32>
    %314 = arith.addf %312, %313 : vector<8x128xf32>
    %cst_285 = arith.constant 0.000000e+00 : f32
    %315 = vector.broadcast %cst_285 : f32 to vector<8x128xf32>
    %316 = arith.maximumf %314, %315 : vector<8x128xf32>
    %317 = vector.broadcast %141 : f32 to vector<8x128xf32>
    %318 = arith.mulf %316, %317 : vector<8x128xf32>
    %319 = vector.broadcast %32 : f32 to vector<8x128xf32>
    %320 = arith.mulf %167, %319 : vector<8x128xf32>
    %321 = vector.broadcast %42 : f32 to vector<8x128xf32>
    %322 = arith.mulf %176, %321 : vector<8x128xf32>
    %323 = vector.broadcast %52 : f32 to vector<8x128xf32>
    %324 = arith.mulf %185, %323 : vector<8x128xf32>
    %325 = vector.broadcast %62 : f32 to vector<8x128xf32>
    %326 = arith.mulf %194, %325 : vector<8x128xf32>
    %327 = vector.broadcast %72 : f32 to vector<8x128xf32>
    %328 = arith.mulf %203, %327 : vector<8x128xf32>
    %329 = vector.broadcast %82 : f32 to vector<8x128xf32>
    %330 = arith.mulf %212, %329 : vector<8x128xf32>
    %331 = vector.broadcast %92 : f32 to vector<8x128xf32>
    %332 = arith.mulf %221, %331 : vector<8x128xf32>
    %333 = vector.broadcast %102 : f32 to vector<8x128xf32>
    %334 = arith.mulf %230, %333 : vector<8x128xf32>
    %335 = vector.broadcast %112 : f32 to vector<8x128xf32>
    %336 = arith.mulf %239, %335 : vector<8x128xf32>
    %337 = vector.broadcast %122 : f32 to vector<8x128xf32>
    %338 = arith.mulf %248, %337 : vector<8x128xf32>
    %339 = arith.addf %320, %322 : vector<8x128xf32>
    %340 = arith.addf %324, %326 : vector<8x128xf32>
    %341 = arith.addf %328, %330 : vector<8x128xf32>
    %342 = arith.addf %332, %334 : vector<8x128xf32>
    %343 = arith.addf %336, %338 : vector<8x128xf32>
    %344 = arith.addf %339, %340 : vector<8x128xf32>
    %345 = arith.addf %341, %342 : vector<8x128xf32>
    %346 = arith.addf %344, %345 : vector<8x128xf32>
    %347 = arith.addf %346, %343 : vector<8x128xf32>
    %348 = vector.broadcast %132 : f32 to vector<8x128xf32>
    %349 = arith.addf %347, %348 : vector<8x128xf32>
    %cst_286 = arith.constant 0.000000e+00 : f32
    %350 = vector.broadcast %cst_286 : f32 to vector<8x128xf32>
    %351 = arith.maximumf %349, %350 : vector<8x128xf32>
    %352 = vector.broadcast %142 : f32 to vector<8x128xf32>
    %353 = arith.mulf %351, %352 : vector<8x128xf32>
    %354 = arith.addf %283, %353 : vector<8x128xf32>
    %355 = vector.broadcast %33 : f32 to vector<8x128xf32>
    %356 = arith.mulf %167, %355 : vector<8x128xf32>
    %357 = vector.broadcast %43 : f32 to vector<8x128xf32>
    %358 = arith.mulf %176, %357 : vector<8x128xf32>
    %359 = vector.broadcast %53 : f32 to vector<8x128xf32>
    %360 = arith.mulf %185, %359 : vector<8x128xf32>
    %361 = vector.broadcast %63 : f32 to vector<8x128xf32>
    %362 = arith.mulf %194, %361 : vector<8x128xf32>
    %363 = vector.broadcast %73 : f32 to vector<8x128xf32>
    %364 = arith.mulf %203, %363 : vector<8x128xf32>
    %365 = vector.broadcast %83 : f32 to vector<8x128xf32>
    %366 = arith.mulf %212, %365 : vector<8x128xf32>
    %367 = vector.broadcast %93 : f32 to vector<8x128xf32>
    %368 = arith.mulf %221, %367 : vector<8x128xf32>
    %369 = vector.broadcast %103 : f32 to vector<8x128xf32>
    %370 = arith.mulf %230, %369 : vector<8x128xf32>
    %371 = vector.broadcast %113 : f32 to vector<8x128xf32>
    %372 = arith.mulf %239, %371 : vector<8x128xf32>
    %373 = vector.broadcast %123 : f32 to vector<8x128xf32>
    %374 = arith.mulf %248, %373 : vector<8x128xf32>
    %375 = arith.addf %356, %358 : vector<8x128xf32>
    %376 = arith.addf %360, %362 : vector<8x128xf32>
    %377 = arith.addf %364, %366 : vector<8x128xf32>
    %378 = arith.addf %368, %370 : vector<8x128xf32>
    %379 = arith.addf %372, %374 : vector<8x128xf32>
    %380 = arith.addf %375, %376 : vector<8x128xf32>
    %381 = arith.addf %377, %378 : vector<8x128xf32>
    %382 = arith.addf %380, %381 : vector<8x128xf32>
    %383 = arith.addf %382, %379 : vector<8x128xf32>
    %384 = vector.broadcast %133 : f32 to vector<8x128xf32>
    %385 = arith.addf %383, %384 : vector<8x128xf32>
    %cst_287 = arith.constant 0.000000e+00 : f32
    %386 = vector.broadcast %cst_287 : f32 to vector<8x128xf32>
    %387 = arith.maximumf %385, %386 : vector<8x128xf32>
    %388 = vector.broadcast %143 : f32 to vector<8x128xf32>
    %389 = arith.mulf %387, %388 : vector<8x128xf32>
    %390 = arith.addf %318, %389 : vector<8x128xf32>
    %391 = vector.broadcast %34 : f32 to vector<8x128xf32>
    %392 = arith.mulf %167, %391 : vector<8x128xf32>
    %393 = vector.broadcast %44 : f32 to vector<8x128xf32>
    %394 = arith.mulf %176, %393 : vector<8x128xf32>
    %395 = vector.broadcast %54 : f32 to vector<8x128xf32>
    %396 = arith.mulf %185, %395 : vector<8x128xf32>
    %397 = vector.broadcast %64 : f32 to vector<8x128xf32>
    %398 = arith.mulf %194, %397 : vector<8x128xf32>
    %399 = vector.broadcast %74 : f32 to vector<8x128xf32>
    %400 = arith.mulf %203, %399 : vector<8x128xf32>
    %401 = vector.broadcast %84 : f32 to vector<8x128xf32>
    %402 = arith.mulf %212, %401 : vector<8x128xf32>
    %403 = vector.broadcast %94 : f32 to vector<8x128xf32>
    %404 = arith.mulf %221, %403 : vector<8x128xf32>
    %405 = vector.broadcast %104 : f32 to vector<8x128xf32>
    %406 = arith.mulf %230, %405 : vector<8x128xf32>
    %407 = vector.broadcast %114 : f32 to vector<8x128xf32>
    %408 = arith.mulf %239, %407 : vector<8x128xf32>
    %409 = vector.broadcast %124 : f32 to vector<8x128xf32>
    %410 = arith.mulf %248, %409 : vector<8x128xf32>
    %411 = arith.addf %392, %394 : vector<8x128xf32>
    %412 = arith.addf %396, %398 : vector<8x128xf32>
    %413 = arith.addf %400, %402 : vector<8x128xf32>
    %414 = arith.addf %404, %406 : vector<8x128xf32>
    %415 = arith.addf %408, %410 : vector<8x128xf32>
    %416 = arith.addf %411, %412 : vector<8x128xf32>
    %417 = arith.addf %413, %414 : vector<8x128xf32>
    %418 = arith.addf %416, %417 : vector<8x128xf32>
    %419 = arith.addf %418, %415 : vector<8x128xf32>
    %420 = vector.broadcast %134 : f32 to vector<8x128xf32>
    %421 = arith.addf %419, %420 : vector<8x128xf32>
    %cst_288 = arith.constant 0.000000e+00 : f32
    %422 = vector.broadcast %cst_288 : f32 to vector<8x128xf32>
    %423 = arith.maximumf %421, %422 : vector<8x128xf32>
    %424 = vector.broadcast %144 : f32 to vector<8x128xf32>
    %425 = arith.mulf %423, %424 : vector<8x128xf32>
    %426 = arith.addf %354, %425 : vector<8x128xf32>
    %427 = vector.broadcast %35 : f32 to vector<8x128xf32>
    %428 = arith.mulf %167, %427 : vector<8x128xf32>
    %429 = vector.broadcast %45 : f32 to vector<8x128xf32>
    %430 = arith.mulf %176, %429 : vector<8x128xf32>
    %431 = vector.broadcast %55 : f32 to vector<8x128xf32>
    %432 = arith.mulf %185, %431 : vector<8x128xf32>
    %433 = vector.broadcast %65 : f32 to vector<8x128xf32>
    %434 = arith.mulf %194, %433 : vector<8x128xf32>
    %435 = vector.broadcast %75 : f32 to vector<8x128xf32>
    %436 = arith.mulf %203, %435 : vector<8x128xf32>
    %437 = vector.broadcast %85 : f32 to vector<8x128xf32>
    %438 = arith.mulf %212, %437 : vector<8x128xf32>
    %439 = vector.broadcast %95 : f32 to vector<8x128xf32>
    %440 = arith.mulf %221, %439 : vector<8x128xf32>
    %441 = vector.broadcast %105 : f32 to vector<8x128xf32>
    %442 = arith.mulf %230, %441 : vector<8x128xf32>
    %443 = vector.broadcast %115 : f32 to vector<8x128xf32>
    %444 = arith.mulf %239, %443 : vector<8x128xf32>
    %445 = vector.broadcast %125 : f32 to vector<8x128xf32>
    %446 = arith.mulf %248, %445 : vector<8x128xf32>
    %447 = arith.addf %428, %430 : vector<8x128xf32>
    %448 = arith.addf %432, %434 : vector<8x128xf32>
    %449 = arith.addf %436, %438 : vector<8x128xf32>
    %450 = arith.addf %440, %442 : vector<8x128xf32>
    %451 = arith.addf %444, %446 : vector<8x128xf32>
    %452 = arith.addf %447, %448 : vector<8x128xf32>
    %453 = arith.addf %449, %450 : vector<8x128xf32>
    %454 = arith.addf %452, %453 : vector<8x128xf32>
    %455 = arith.addf %454, %451 : vector<8x128xf32>
    %456 = vector.broadcast %135 : f32 to vector<8x128xf32>
    %457 = arith.addf %455, %456 : vector<8x128xf32>
    %cst_289 = arith.constant 0.000000e+00 : f32
    %458 = vector.broadcast %cst_289 : f32 to vector<8x128xf32>
    %459 = arith.maximumf %457, %458 : vector<8x128xf32>
    %460 = vector.broadcast %145 : f32 to vector<8x128xf32>
    %461 = arith.mulf %459, %460 : vector<8x128xf32>
    %462 = arith.addf %390, %461 : vector<8x128xf32>
    %463 = vector.broadcast %36 : f32 to vector<8x128xf32>
    %464 = arith.mulf %167, %463 : vector<8x128xf32>
    %465 = vector.broadcast %46 : f32 to vector<8x128xf32>
    %466 = arith.mulf %176, %465 : vector<8x128xf32>
    %467 = vector.broadcast %56 : f32 to vector<8x128xf32>
    %468 = arith.mulf %185, %467 : vector<8x128xf32>
    %469 = vector.broadcast %66 : f32 to vector<8x128xf32>
    %470 = arith.mulf %194, %469 : vector<8x128xf32>
    %471 = vector.broadcast %76 : f32 to vector<8x128xf32>
    %472 = arith.mulf %203, %471 : vector<8x128xf32>
    %473 = vector.broadcast %86 : f32 to vector<8x128xf32>
    %474 = arith.mulf %212, %473 : vector<8x128xf32>
    %475 = vector.broadcast %96 : f32 to vector<8x128xf32>
    %476 = arith.mulf %221, %475 : vector<8x128xf32>
    %477 = vector.broadcast %106 : f32 to vector<8x128xf32>
    %478 = arith.mulf %230, %477 : vector<8x128xf32>
    %479 = vector.broadcast %116 : f32 to vector<8x128xf32>
    %480 = arith.mulf %239, %479 : vector<8x128xf32>
    %481 = vector.broadcast %126 : f32 to vector<8x128xf32>
    %482 = arith.mulf %248, %481 : vector<8x128xf32>
    %483 = arith.addf %464, %466 : vector<8x128xf32>
    %484 = arith.addf %468, %470 : vector<8x128xf32>
    %485 = arith.addf %472, %474 : vector<8x128xf32>
    %486 = arith.addf %476, %478 : vector<8x128xf32>
    %487 = arith.addf %480, %482 : vector<8x128xf32>
    %488 = arith.addf %483, %484 : vector<8x128xf32>
    %489 = arith.addf %485, %486 : vector<8x128xf32>
    %490 = arith.addf %488, %489 : vector<8x128xf32>
    %491 = arith.addf %490, %487 : vector<8x128xf32>
    %492 = vector.broadcast %136 : f32 to vector<8x128xf32>
    %493 = arith.addf %491, %492 : vector<8x128xf32>
    %cst_290 = arith.constant 0.000000e+00 : f32
    %494 = vector.broadcast %cst_290 : f32 to vector<8x128xf32>
    %495 = arith.maximumf %493, %494 : vector<8x128xf32>
    %496 = vector.broadcast %146 : f32 to vector<8x128xf32>
    %497 = arith.mulf %495, %496 : vector<8x128xf32>
    %498 = arith.addf %426, %497 : vector<8x128xf32>
    %499 = vector.broadcast %37 : f32 to vector<8x128xf32>
    %500 = arith.mulf %167, %499 : vector<8x128xf32>
    %501 = vector.broadcast %47 : f32 to vector<8x128xf32>
    %502 = arith.mulf %176, %501 : vector<8x128xf32>
    %503 = vector.broadcast %57 : f32 to vector<8x128xf32>
    %504 = arith.mulf %185, %503 : vector<8x128xf32>
    %505 = vector.broadcast %67 : f32 to vector<8x128xf32>
    %506 = arith.mulf %194, %505 : vector<8x128xf32>
    %507 = vector.broadcast %77 : f32 to vector<8x128xf32>
    %508 = arith.mulf %203, %507 : vector<8x128xf32>
    %509 = vector.broadcast %87 : f32 to vector<8x128xf32>
    %510 = arith.mulf %212, %509 : vector<8x128xf32>
    %511 = vector.broadcast %97 : f32 to vector<8x128xf32>
    %512 = arith.mulf %221, %511 : vector<8x128xf32>
    %513 = vector.broadcast %107 : f32 to vector<8x128xf32>
    %514 = arith.mulf %230, %513 : vector<8x128xf32>
    %515 = vector.broadcast %117 : f32 to vector<8x128xf32>
    %516 = arith.mulf %239, %515 : vector<8x128xf32>
    %517 = vector.broadcast %127 : f32 to vector<8x128xf32>
    %518 = arith.mulf %248, %517 : vector<8x128xf32>
    %519 = arith.addf %500, %502 : vector<8x128xf32>
    %520 = arith.addf %504, %506 : vector<8x128xf32>
    %521 = arith.addf %508, %510 : vector<8x128xf32>
    %522 = arith.addf %512, %514 : vector<8x128xf32>
    %523 = arith.addf %516, %518 : vector<8x128xf32>
    %524 = arith.addf %519, %520 : vector<8x128xf32>
    %525 = arith.addf %521, %522 : vector<8x128xf32>
    %526 = arith.addf %524, %525 : vector<8x128xf32>
    %527 = arith.addf %526, %523 : vector<8x128xf32>
    %528 = vector.broadcast %137 : f32 to vector<8x128xf32>
    %529 = arith.addf %527, %528 : vector<8x128xf32>
    %cst_291 = arith.constant 0.000000e+00 : f32
    %530 = vector.broadcast %cst_291 : f32 to vector<8x128xf32>
    %531 = arith.maximumf %529, %530 : vector<8x128xf32>
    %532 = vector.broadcast %147 : f32 to vector<8x128xf32>
    %533 = arith.mulf %531, %532 : vector<8x128xf32>
    %534 = arith.addf %462, %533 : vector<8x128xf32>
    %535 = vector.broadcast %38 : f32 to vector<8x128xf32>
    %536 = arith.mulf %167, %535 : vector<8x128xf32>
    %537 = vector.broadcast %48 : f32 to vector<8x128xf32>
    %538 = arith.mulf %176, %537 : vector<8x128xf32>
    %539 = vector.broadcast %58 : f32 to vector<8x128xf32>
    %540 = arith.mulf %185, %539 : vector<8x128xf32>
    %541 = vector.broadcast %68 : f32 to vector<8x128xf32>
    %542 = arith.mulf %194, %541 : vector<8x128xf32>
    %543 = vector.broadcast %78 : f32 to vector<8x128xf32>
    %544 = arith.mulf %203, %543 : vector<8x128xf32>
    %545 = vector.broadcast %88 : f32 to vector<8x128xf32>
    %546 = arith.mulf %212, %545 : vector<8x128xf32>
    %547 = vector.broadcast %98 : f32 to vector<8x128xf32>
    %548 = arith.mulf %221, %547 : vector<8x128xf32>
    %549 = vector.broadcast %108 : f32 to vector<8x128xf32>
    %550 = arith.mulf %230, %549 : vector<8x128xf32>
    %551 = vector.broadcast %118 : f32 to vector<8x128xf32>
    %552 = arith.mulf %239, %551 : vector<8x128xf32>
    %553 = vector.broadcast %128 : f32 to vector<8x128xf32>
    %554 = arith.mulf %248, %553 : vector<8x128xf32>
    %555 = arith.addf %536, %538 : vector<8x128xf32>
    %556 = arith.addf %540, %542 : vector<8x128xf32>
    %557 = arith.addf %544, %546 : vector<8x128xf32>
    %558 = arith.addf %548, %550 : vector<8x128xf32>
    %559 = arith.addf %552, %554 : vector<8x128xf32>
    %560 = arith.addf %555, %556 : vector<8x128xf32>
    %561 = arith.addf %557, %558 : vector<8x128xf32>
    %562 = arith.addf %560, %561 : vector<8x128xf32>
    %563 = arith.addf %562, %559 : vector<8x128xf32>
    %564 = vector.broadcast %138 : f32 to vector<8x128xf32>
    %565 = arith.addf %563, %564 : vector<8x128xf32>
    %cst_292 = arith.constant 0.000000e+00 : f32
    %566 = vector.broadcast %cst_292 : f32 to vector<8x128xf32>
    %567 = arith.maximumf %565, %566 : vector<8x128xf32>
    %568 = vector.broadcast %148 : f32 to vector<8x128xf32>
    %569 = arith.mulf %567, %568 : vector<8x128xf32>
    %570 = arith.addf %498, %569 : vector<8x128xf32>
    %571 = vector.broadcast %39 : f32 to vector<8x128xf32>
    %572 = arith.mulf %167, %571 : vector<8x128xf32>
    %573 = vector.broadcast %49 : f32 to vector<8x128xf32>
    %574 = arith.mulf %176, %573 : vector<8x128xf32>
    %575 = vector.broadcast %59 : f32 to vector<8x128xf32>
    %576 = arith.mulf %185, %575 : vector<8x128xf32>
    %577 = vector.broadcast %69 : f32 to vector<8x128xf32>
    %578 = arith.mulf %194, %577 : vector<8x128xf32>
    %579 = vector.broadcast %79 : f32 to vector<8x128xf32>
    %580 = arith.mulf %203, %579 : vector<8x128xf32>
    %581 = vector.broadcast %89 : f32 to vector<8x128xf32>
    %582 = arith.mulf %212, %581 : vector<8x128xf32>
    %583 = vector.broadcast %99 : f32 to vector<8x128xf32>
    %584 = arith.mulf %221, %583 : vector<8x128xf32>
    %585 = vector.broadcast %109 : f32 to vector<8x128xf32>
    %586 = arith.mulf %230, %585 : vector<8x128xf32>
    %587 = vector.broadcast %119 : f32 to vector<8x128xf32>
    %588 = arith.mulf %239, %587 : vector<8x128xf32>
    %589 = vector.broadcast %129 : f32 to vector<8x128xf32>
    %590 = arith.mulf %248, %589 : vector<8x128xf32>
    %591 = arith.addf %572, %574 : vector<8x128xf32>
    %592 = arith.addf %576, %578 : vector<8x128xf32>
    %593 = arith.addf %580, %582 : vector<8x128xf32>
    %594 = arith.addf %584, %586 : vector<8x128xf32>
    %595 = arith.addf %588, %590 : vector<8x128xf32>
    %596 = arith.addf %591, %592 : vector<8x128xf32>
    %597 = arith.addf %593, %594 : vector<8x128xf32>
    %598 = arith.addf %596, %597 : vector<8x128xf32>
    %599 = arith.addf %598, %595 : vector<8x128xf32>
    %600 = vector.broadcast %139 : f32 to vector<8x128xf32>
    %601 = arith.addf %599, %600 : vector<8x128xf32>
    %cst_293 = arith.constant 0.000000e+00 : f32
    %602 = vector.broadcast %cst_293 : f32 to vector<8x128xf32>
    %603 = arith.maximumf %601, %602 : vector<8x128xf32>
    %604 = vector.broadcast %149 : f32 to vector<8x128xf32>
    %605 = arith.mulf %603, %604 : vector<8x128xf32>
    %606 = arith.addf %534, %605 : vector<8x128xf32>
    %607 = arith.addf %570, %606 : vector<8x128xf32>
    %608 = vector.broadcast %150 : f32 to vector<8x128xf32>
    %609 = arith.addf %607, %608 : vector<8x128xf32>
    %610 = arith.index_cast %152 : i32 to index
    %c0_294 = arith.constant 0 : index
    %611 = vector.load %arg8[%610, %c0_294] : memref<8x128xf32, #tpu.memory_space<vmem>>, vector<8x128xf32>
    tpu.vector_store %arg8[%610, %c0_294], %609 {strides = array<i32>} : memref<8x128xf32, #tpu.memory_space<vmem>>, vector<8x128xf32>,
    %c1_i32 = arith.constant 1 : i32
    return
  }
  func.func @transform_0(%arg0: i32) -> (i32, i32) {
    %c0_i32 = arith.constant 0 : i32
    %c0_i32_0 = arith.constant 0 : i32
    %c0_i32_1 = arith.constant 0 : i32
    return %c0_i32, %c0_i32_0 : i32, i32
  }
  func.func @transform_1(%arg0: i32) -> i32 {
    %c0_i32 = arith.constant 0 : i32
    %c0_i32_0 = arith.constant 0 : i32
    return %c0_i32 : i32
  }
  func.func @transform_2(%arg0: i32) -> (i32, i32) {
    %c0_i32 = arith.constant 0 : i32
    %c0_i32_0 = arith.constant 0 : i32
    %c0_i32_1 = arith.constant 0 : i32
    return %c0_i32, %c0_i32_0 : i32, i32
  }
  func.func @transform_3(%arg0: i32) -> i32 {
    %c0_i32 = arith.constant 0 : i32
    %c0_i32_0 = arith.constant 0 : i32
    return %c0_i32 : i32
  }
  func.func @transform_4(%arg0: i32) -> (i32, i32) {
    %c0_i32 = arith.constant 0 : i32
    %c0_i32_0 = arith.constant 0 : i32
    %c0_i32_1 = arith.constant 0 : i32
    return %c0_i32, %c0_i32_0 : i32, i32
  }
  func.func @transform_5(%arg0: i32) -> i32 {
    %c0_i32 = arith.constant 0 : i32
    %c0_i32_0 = arith.constant 0 : i32
    return %c0_i32 : i32
  }
  func.func @transform_6(%arg0: i32) -> (i32, i32, i32) {
    %c0_i32 = arith.constant 0 : i32
    %c0_i32_0 = arith.constant 0 : i32
    %c0_i32_1 = arith.constant 0 : i32
    return %c0_i32, %arg0, %c0_i32_0 : i32, i32, i32
  }
  func.func @transform_7(%arg0: i32) -> (i32, i32) {
    %c0_i32 = arith.constant 0 : i32
    %c0_i32_0 = arith.constant 0 : i32
    return %arg0, %c0_i32 : i32, i32
  }
}

</mosaic_0001>

<llo_original>
// kernel: circle_model_v2_forward.1
$region0: #{circle_model_v2_forward.1}
  #allocation0 [shape = 'u32[]', space=smem, size = 0x4, offset = 0x4, fixed_abs, tag = 'smem constant byte address 0x4 - core index']
  #allocation1 [shape = 'u32[144,128]{1,0:T(1,128)}', space=vmem, size = 0x12000, scoped, tag = 'internal scratch']
  #allocation2 [shape = 'f32[1]{0:T(128)S(6)}', space=smem, size = 0x200, scoped, tag = 'scoped memory for circle_model_v2_forward.1']
  %s0 = inlined_call_operand.vmem [shape: f32[2,10], index: 0, kind: input, shape index: {}]
  %s1 = inlined_call_operand.vmem [shape: f32[10], index: 1, kind: input, shape index: {}]
  %s2 = inlined_call_operand.vmem [shape: f32[10,10], index: 2, kind: input, shape index: {}]
  %s3 = inlined_call_operand.vmem [shape: f32[10], index: 3, kind: input, shape index: {}]
  %s4 = inlined_call_operand.vmem [shape: f32[10,1], index: 4, kind: input, shape index: {}]
  %s5 = inlined_call_operand.<no memory space> [shape: f32[1], index: 5, kind: input, shape index: {}]
  %s6 = inlined_call_operand.vmem [shape: f32[2,8,128], index: 6, kind: input, shape index: {}]
  %s7 = inlined_call_operand.vmem [shape: f32[8,128], index: 7, kind: output, shape index: {}]
  %s8 = sld [smem:[#allocation0]]
  $region58: #{circle_model_v2_forward.1} parent=0
    _
  %s10 = ssub.s32 1, %s8
  %s11 = scalar_select 0, %s10, %s8
  %12 = sst [smem:[#allocation2]] %s5
  $region1: #{circle_model_v2_forward.1} parent=0
    #allocation3 [shape = 'u8[1024]{0}', space=smem, size = 0x400, scoped, tag = 'input window, operand 0, single buffered']
    #allocation4 [shape = 's32[1]{0}', space=sflag, size = 0x4, scoped, tag = 'scoped memory for circle_model_v2_forward.1']
    #allocation5 [shape = 'u8[512]{0}', space=smem, size = 0x200, scoped, tag = 'input window, operand 1, single buffered']
    #allocation6 [shape = 's32[1]{0}', space=sflag, size = 0x4, scoped, tag = 'scoped memory for circle_model_v2_forward.1']
    #allocation7 [shape = 'u8[8192]{0}', space=smem, size = 0x2000, scoped, tag = 'input window, operand 2, single buffered']
    #allocation8 [shape = 'u8[512]{0}', space=smem, size = 0x200, scoped, tag = 'input window, operand 3, single buffered']
    #allocation9 [shape = 's32[1]{0}', space=sflag, size = 0x4, scoped, tag = 'scoped memory for circle_model_v2_forward.1']
    #allocation10 [shape = 'u8[8192]{0}', space=smem, size = 0x2000, scoped, tag = 'input window, operand 4, single buffered']
    %13 = vsyncpa [#allocation4], 0
    %14 = vsyncpa [#allocation6], 0
    %15 = vsyncpa [#allocation9], 0
    // Predicated region
    $region2: #{circle_model_v2_forward.1} parent=1 // pred_check
      _
    $region3: #{circle_model_v2_forward.1} parent=1 // pred_check_branch
      %17 = sbr.rel (0) target = $region5
    $region4: #{circle_model_v2_forward.1} parent=1 // pred_region
      %s19 = ssub.s32 32, 32
      %20 = vsyncadd [#allocation4], %s19
      %s22 = sshll.u32 %s0, 4
      %s23 = int_to_ptr.vmem [resolvable:$true] %s22
      %25 = dma.vmem_to_smem %s23, 32, [#allocation3], [#allocation4]
    $region5: #{circle_model_v2_forward.1} parent=1 // pred_fallthru
      _
    // Predicated region
    $region6: #{circle_model_v2_forward.1} parent=1 // pred_check
      _
    $region7: #{circle_model_v2_forward.1} parent=1 // pred_check_branch
      %27 = sbr.rel (0) target = $region9
    $region8: #{circle_model_v2_forward.1} parent=1 // pred_region
      %s29 = ssub.s32 16, 16
      %30 = vsyncadd [#allocation6], %s29
      %s32 = sshll.u32 %s1, 4
      %s33 = int_to_ptr.vmem [resolvable:$true] %s32
      %35 = dma.vmem_to_smem %s33, 16, [#allocation5], [#allocation6]
    $region9: #{circle_model_v2_forward.1} parent=1 // pred_fallthru
      _
    // Predicated region
    $region10: #{circle_model_v2_forward.1} parent=1 // pred_check
      _
    $region11: #{circle_model_v2_forward.1} parent=1 // pred_check_branch
      %37 = sbr.rel (0) target = $region13
    $region12: #{circle_model_v2_forward.1} parent=1 // pred_region
      %s39 = ssub.s32 256, 256
      %40 = vsyncadd [#allocation6], %s39
      %s41 = sshll.u32 %s2, 4
      %s42 = int_to_ptr.vmem [resolvable:$true] %s41
      %47 = dma.vmem_to_smem %s42, 256, [#allocation7], [#allocation6], 128, 128, 8
    $region13: #{circle_model_v2_forward.1} parent=1 // pred_fallthru
      _
    // Predicated region
    $region14: #{circle_model_v2_forward.1} parent=1 // pred_check
      _
    $region15: #{circle_model_v2_forward.1} parent=1 // pred_check_branch
      %49 = sbr.rel (0) target = $region17
    $region16: #{circle_model_v2_forward.1} parent=1 // pred_region
      %s51 = ssub.s32 16, 16
      %52 = vsyncadd [#allocation9], %s51
      %s54 = sshll.u32 %s3, 4
      %s55 = int_to_ptr.vmem [resolvable:$true] %s54
      %57 = dma.vmem_to_smem %s55, 16, [#allocation8], [#allocation9]
    $region17: #{circle_model_v2_forward.1} parent=1 // pred_fallthru
      _
    // Predicated region
    $region18: #{circle_model_v2_forward.1} parent=1 // pred_check
      _
    $region19: #{circle_model_v2_forward.1} parent=1 // pred_check_branch
      %59 = sbr.rel (0) target = $region21
    $region20: #{circle_model_v2_forward.1} parent=1 // pred_region
      %s61 = ssub.s32 256, 256
      %62 = vsyncadd [#allocation9], %s61
      %s63 = sshll.u32 %s4, 4
      %s64 = int_to_ptr.vmem [resolvable:$true] %s63
      %69 = dma.vmem_to_smem %s64, 256, [#allocation10], [#allocation9], 128, 128, 8
    $region21: #{circle_model_v2_forward.1} parent=1 // pred_fallthru
      _
    // Predicated region
    $region22: #{circle_model_v2_forward.1} parent=1 // pred_check
      _
    $region23: #{circle_model_v2_forward.1} parent=1 // pred_check_branch
      %71 = sbr.rel (0) target = $region25
    $region24: #{circle_model_v2_forward.1} parent=1 // pred_region
      _
    $region25: #{circle_model_v2_forward.1} parent=1 // pred_fallthru
      _
    // Predicated region
    $region26: #{circle_model_v2_forward.1} parent=1 // pred_check
      _
    $region27: #{circle_model_v2_forward.1} parent=1 // pred_check_branch
      %73 = sbr.rel (0) target = $region29
    $region28: #{circle_model_v2_forward.1} parent=1 // pred_region
      _
    $region29: #{circle_model_v2_forward.1} parent=1 // pred_fallthru
      _
    // Predicated region
    $region30: #{circle_model_v2_forward.1} parent=1 // pred_check
      _
    $region31: #{circle_model_v2_forward.1} parent=1 // pred_check_branch
      %75 = sbr.rel (0) target = $region33
    $region32: #{circle_model_v2_forward.1} parent=1 // pred_region
      %76 = dma.done [#allocation4], 32
    $region33: #{circle_model_v2_forward.1} parent=1 // pred_fallthru
      _
    // Predicated region
    $region34: #{circle_model_v2_forward.1} parent=1 // pred_check
      _
    $region35: #{circle_model_v2_forward.1} parent=1 // pred_check_branch
      %78 = sbr.rel (0) target = $region37
    $region36: #{circle_model_v2_forward.1} parent=1 // pred_region
      %79 = dma.done [#allocation6], 16
    $region37: #{circle_model_v2_forward.1} parent=1 // pred_fallthru
      _
    // Predicated region
    $region38: #{circle_model_v2_forward.1} parent=1 // pred_check
      _
    $region39: #{circle_model_v2_forward.1} parent=1 // pred_check_branch
      %81 = sbr.rel (0) target = $region41
    $region40: #{circle_model_v2_forward.1} parent=1 // pred_region
      %82 = dma.done [#allocation6], 256
    $region41: #{circle_model_v2_forward.1} parent=1 // pred_fallthru
      _
    // Predicated region
    $region42: #{circle_model_v2_forward.1} parent=1 // pred_check
      _
    $region43: #{circle_model_v2_forward.1} parent=1 // pred_check_branch
      %84 = sbr.rel (0) target = $region45
    $region44: #{circle_model_v2_forward.1} parent=1 // pred_region
      %85 = dma.done [#allocation9], 16
    $region45: #{circle_model_v2_forward.1} parent=1 // pred_fallthru
      _
    // Predicated region
    $region46: #{circle_model_v2_forward.1} parent=1 // pred_check
      _
    $region47: #{circle_model_v2_forward.1} parent=1 // pred_check_branch
      %87 = sbr.rel (0) target = $region49
    $region48: #{circle_model_v2_forward.1} parent=1 // pred_region
      %88 = dma.done [#allocation9], 256
    $region49: #{circle_model_v2_forward.1} parent=1 // pred_fallthru
      _
    %89 = sfence
    %s90 = sld [smem:[#allocation3]]
    %s91 = sld [smem:[#allocation3 + $0x1]]
    %s92 = sld [smem:[#allocation3 + $0x2]]
    %s93 = sld [smem:[#allocation3 + $0x3]]
    %s94 = sld [smem:[#allocation3 + $0x4]]
    %s95 = sld [smem:[#allocation3 + $0x5]]
    %s96 = sld [smem:[#allocation3 + $0x6]]
    %s97 = sld [smem:[#allocation3 + $0x7]]
    %s98 = sld [smem:[#allocation3 + $0x8]]
    %s99 = sld [smem:[#allocation3 + $0x9]]
    %s100 = sld [smem:[#allocation3 + $0x80]]
    %s101 = sld [smem:[#allocation3 + $0x81]]
    %s102 = sld [smem:[#allocation3 + $0x82]]
    %s103 = sld [smem:[#allocation3 + $0x83]]
    %s104 = sld [smem:[#allocation3 + $0x84]]
    %s105 = sld [smem:[#allocation3 + $0x85]]
    %s106 = sld [smem:[#allocation3 + $0x86]]
    %s107 = sld [smem:[#allocation3 + $0x87]]
    %s108 = sld [smem:[#allocation3 + $0x88]]
    %s109 = sld [smem:[#allocation3 + $0x89]]
    %s110 = sld [smem:[#allocation5]]
    %s111 = sld [smem:[#allocation5 + $0x1]]
    %s112 = sld [smem:[#allocation5 + $0x2]]
    %s113 = sld [smem:[#allocation5 + $0x3]]
    %s114 = sld [smem:[#allocation5 + $0x4]]
    %s115 = sld [smem:[#allocation5 + $0x5]]
    %s116 = sld [smem:[#allocation5 + $0x6]]
    %s117 = sld [smem:[#allocation5 + $0x7]]
    %s118 = sld [smem:[#allocation5 + $0x8]]
    %s119 = sld [smem:[#allocation5 + $0x9]]
    %s120 = sld [smem:[#allocation7]]
    %s121 = sld [smem:[#allocation7 + $0x1]]
    %s122 = sld [smem:[#allocation7 + $0x2]]
    %s123 = sld [smem:[#allocation7 + $0x3]]
    %s124 = sld [smem:[#allocation7 + $0x4]]
    %s125 = sld [smem:[#allocation7 + $0x5]]
    %s126 = sld [smem:[#allocation7 + $0x6]]
    %s127 = sld [smem:[#allocation7 + $0x7]]
    %s128 = sld [smem:[#allocation7 + $0x8]]
    %s129 = sld [smem:[#allocation7 + $0x9]]
    %s130 = sld [smem:[#allocation7 + $0x80]]
    %s131 = sld [smem:[#allocation7 + $0x81]]
    %s132 = sld [smem:[#allocation7 + $0x82]]
    %s133 = sld [smem:[#allocation7 + $0x83]]
    %s134 = sld [smem:[#allocation7 + $0x84]]
    %s135 = sld [smem:[#allocation7 + $0x85]]
    %s136 = sld [smem:[#allocation7 + $0x86]]
    %s137 = sld [smem:[#allocation7 + $0x87]]
    %s138 = sld [smem:[#allocation7 + $0x88]]
    %s139 = sld [smem:[#allocation7 + $0x89]]
    %s140 = sld [smem:[#allocation7 + $0x100]]
    %s141 = sld [smem:[#allocation7 + $0x101]]
    %s142 = sld [smem:[#allocation7 + $0x102]]
    %s143 = sld [smem:[#allocation7 + $0x103]]
    %s144 = sld [smem:[#allocation7 + $0x104]]
    %s145 = sld [smem:[#allocation7 + $0x105]]
    %s146 = sld [smem:[#allocation7 + $0x106]]
    %s147 = sld [smem:[#allocation7 + $0x107]]
    %s148 = sld [smem:[#allocation7 + $0x108]]
    %s149 = sld [smem:[#allocation7 + $0x109]]
    %s150 = sld [smem:[#allocation7 + $0x180]]
    %s151 = sld [smem:[#allocation7 + $0x181]]
    %s152 = sld [smem:[#allocation7 + $0x182]]
    %s153 = sld [smem:[#allocation7 + $0x183]]
    %s154 = sld [smem:[#allocation7 + $0x184]]
    %s155 = sld [smem:[#allocation7 + $0x185]]
    %s156 = sld [smem:[#allocation7 + $0x186]]
    %s157 = sld [smem:[#allocation7 + $0x187]]
    %s158 = sld [smem:[#allocation7 + $0x188]]
    %s159 = sld [smem:[#allocation7 + $0x189]]
    %s160 = sld [smem:[#allocation7 + $0x200]]
    %s161 = sld [smem:[#allocation7 + $0x201]]
    %s162 = sld [smem:[#allocation7 + $0x202]]
    %s163 = sld [smem:[#allocation7 + $0x203]]
    %s164 = sld [smem:[#allocation7 + $0x204]]
    %s165 = sld [smem:[#allocation7 + $0x205]]
    %s166 = sld [smem:[#allocation7 + $0x206]]
    %s167 = sld [smem:[#allocation7 + $0x207]]
    %s168 = sld [smem:[#allocation7 + $0x208]]
    %s169 = sld [smem:[#allocation7 + $0x209]]
    %s170 = sld [smem:[#allocation7 + $0x280]]
    %s171 = sld [smem:[#allocation7 + $0x281]]
    %s172 = sld [smem:[#allocation7 + $0x282]]
    %s173 = sld [smem:[#allocation7 + $0x283]]
    %s174 = sld [smem:[#allocation7 + $0x284]]
    %s175 = sld [smem:[#allocation7 + $0x285]]
    %s176 = sld [smem:[#allocation7 + $0x286]]
    %s177 = sld [smem:[#allocation7 + $0x287]]
    %s178 = sld [smem:[#allocation7 + $0x288]]
    %s179 = sld [smem:[#allocation7 + $0x289]]
    %s180 = sld [smem:[#allocation7 + $0x300]]
    %s181 = sld [smem:[#allocation7 + $0x301]]
    %s182 = sld [smem:[#allocation7 + $0x302]]
    %s183 = sld [smem:[#allocation7 + $0x303]]
    %s184 = sld [smem:[#allocation7 + $0x304]]
    %s185 = sld [smem:[#allocation7 + $0x305]]
    %s186 = sld [smem:[#allocation7 + $0x306]]
    %s187 = sld [smem:[#allocation7 + $0x307]]
    %s188 = sld [smem:[#allocation7 + $0x308]]
    %s189 = sld [smem:[#allocation7 + $0x309]]
    %s190 = sld [smem:[#allocation7 + $0x380]]
    %s191 = sld [smem:[#allocation7 + $0x381]]
    %s192 = sld [smem:[#allocation7 + $0x382]]
    %s193 = sld [smem:[#allocation7 + $0x383]]
    %s194 = sld [smem:[#allocation7 + $0x384]]
    %s195 = sld [smem:[#allocation7 + $0x385]]
    %s196 = sld [smem:[#allocation7 + $0x386]]
    %s197 = sld [smem:[#allocation7 + $0x387]]
    %s198 = sld [smem:[#allocation7 + $0x388]]
    %s199 = sld [smem:[#allocation7 + $0x389]]
    %s200 = sld [smem:[#allocation7 + $0x400]]
    %s201 = sld [smem:[#allocation7 + $0x401]]
    %s202 = sld [smem:[#allocation7 + $0x402]]
    %s203 = sld [smem:[#allocation7 + $0x403]]
    %s204 = sld [smem:[#allocation7 + $0x404]]
    %s205 = sld [smem:[#allocation7 + $0x405]]
    %s206 = sld [smem:[#allocation7 + $0x406]]
    %s207 = sld [smem:[#allocation7 + $0x407]]
    %s208 = sld [smem:[#allocation7 + $0x408]]
    %s209 = sld [smem:[#allocation7 + $0x409]]
    %s210 = sld [smem:[#allocation7 + $0x480]]
    %s211 = sld [smem:[#allocation7 + $0x481]]
    %s212 = sld [smem:[#allocation7 + $0x482]]
    %s213 = sld [smem:[#allocation7 + $0x483]]
    %s214 = sld [smem:[#allocation7 + $0x484]]
    %s215 = sld [smem:[#allocation7 + $0x485]]
    %s216 = sld [smem:[#allocation7 + $0x486]]
    %s217 = sld [smem:[#allocation7 + $0x487]]
    %s218 = sld [smem:[#allocation7 + $0x488]]
    %s219 = sld [smem:[#allocation7 + $0x489]]
    %s220 = sld [smem:[#allocation8]]
    %s221 = sld [smem:[#allocation8 + $0x1]]
    %s222 = sld [smem:[#allocation8 + $0x2]]
    %s223 = sld [smem:[#allocation8 + $0x3]]
    %s224 = sld [smem:[#allocation8 + $0x4]]
    %s225 = sld [smem:[#allocation8 + $0x5]]
    %s226 = sld [smem:[#allocation8 + $0x6]]
    %s227 = sld [smem:[#allocation8 + $0x7]]
    %s228 = sld [smem:[#allocation8 + $0x8]]
    %s229 = sld [smem:[#allocation8 + $0x9]]
    %s230 = sld [smem:[#allocation10]]
    %s231 = sld [smem:[#allocation10 + $0x80]]
    %s232 = sld [smem:[#allocation10 + $0x100]]
    %s233 = sld [smem:[#allocation10 + $0x180]]
    %s234 = sld [smem:[#allocation10 + $0x200]]
    %s235 = sld [smem:[#allocation10 + $0x280]]
    %s236 = sld [smem:[#allocation10 + $0x300]]
    %s237 = sld [smem:[#allocation10 + $0x380]]
    %s238 = sld [smem:[#allocation10 + $0x400]]
    %s239 = sld [smem:[#allocation10 + $0x480]]
    %s240 = sld [smem:[#allocation2]]
    %v241 = vld [vmem:[%s6] sm:$0xff]
    %s242 = sadd.s32 0, 8
    %s243 = scalar_lea.vmem %s6, %s242
    %v244 = vld [vmem:[%s243] sm:$0xff]
    %v245 = vstv %s90
    %v246 = vmul.f32 %v241, %v245
    %v247 = vstv %s100
    %v248 = vmul.f32 %v244, %v247
    %v249 = vadd.f32 %v246, %v248
    %v250 = vstv %s110
    %v251 = vadd.f32 %v249, %v250
    %v252 = vmax.f32 %v251, 0.0
    %v253 = vstv %s91
    %v254 = vmul.f32 %v241, %v253
    %v255 = vstv %s101
    %v256 = vmul.f32 %v244, %v255
    %v257 = vadd.f32 %v254, %v256
    %v258 = vstv %s111
    %v259 = vadd.f32 %v257, %v258
    %v260 = vmax.f32 %v259, 0.0
    %v261 = vstv %s92
    %v262 = vmul.f32 %v241, %v261
    %v263 = vstv %s102
    %v264 = vmul.f32 %v244, %v263
    %v265 = vadd.f32 %v262, %v264
    %v266 = vstv %s112
    %v267 = vadd.f32 %v265, %v266
    %v268 = vmax.f32 %v267, 0.0
    %v269 = vstv %s93
    %v270 = vmul.f32 %v241, %v269
    %v271 = vstv %s103
    %v272 = vmul.f32 %v244, %v271
    %v273 = vadd.f32 %v270, %v272
    %v274 = vstv %s113
    %v275 = vadd.f32 %v273, %v274
    %v276 = vmax.f32 %v275, 0.0
    %v277 = vstv %s94
    %v278 = vmul.f32 %v241, %v277
    %v279 = vstv %s104
    %v280 = vmul.f32 %v244, %v279
    %v281 = vadd.f32 %v278, %v280
    %v282 = vstv %s114
    %v283 = vadd.f32 %v281, %v282
    %v284 = vmax.f32 %v283, 0.0
    %v285 = vstv %s95
    %v286 = vmul.f32 %v241, %v285
    %v287 = vstv %s105
    %v288 = vmul.f32 %v244, %v287
    %v289 = vadd.f32 %v286, %v288
    %v290 = vstv %s115
    %v291 = vadd.f32 %v289, %v290
    %v292 = vmax.f32 %v291, 0.0
    %v293 = vstv %s96
    %v294 = vmul.f32 %v241, %v293
    %v295 = vstv %s106
    %v296 = vmul.f32 %v244, %v295
    %v297 = vadd.f32 %v294, %v296
    %v298 = vstv %s116
    %v299 = vadd.f32 %v297, %v298
    %v300 = vmax.f32 %v299, 0.0
    %v301 = vstv %s97
    %v302 = vmul.f32 %v241, %v301
    %v303 = vstv %s107
    %v304 = vmul.f32 %v244, %v303
    %v305 = vadd.f32 %v302, %v304
    %v306 = vstv %s117
    %v307 = vadd.f32 %v305, %v306
    %v308 = vmax.f32 %v307, 0.0
    %v309 = vstv %s98
    %v310 = vmul.f32 %v241, %v309
    %v311 = vstv %s108
    %v312 = vmul.f32 %v244, %v311
    %v313 = vadd.f32 %v310, %v312
    %v314 = vstv %s118
    %v315 = vadd.f32 %v313, %v314
    %v316 = vmax.f32 %v315, 0.0
    %v317 = vstv %s99
    %v318 = vmul.f32 %v241, %v317
    %v319 = vstv %s109
    %v320 = vmul.f32 %v244, %v319
    %v321 = vadd.f32 %v318, %v320
    %v322 = vstv %s119
    %v323 = vadd.f32 %v321, %v322
    %v324 = vmax.f32 %v323, 0.0
    %v325 = vstv %s120
    %v326 = vmul.f32 %v252, %v325
    %v327 = vstv %s130
    %v328 = vmul.f32 %v260, %v327
    %v329 = vstv %s140
    %v330 = vmul.f32 %v268, %v329
    %v331 = vstv %s150
    %v332 = vmul.f32 %v276, %v331
    %v333 = vstv %s160
    %v334 = vmul.f32 %v284, %v333
    %v335 = vstv %s170
    %v336 = vmul.f32 %v292, %v335
    %v337 = vstv %s180
    %v338 = vmul.f32 %v300, %v337
    %v339 = vstv %s190
    %v340 = vmul.f32 %v308, %v339
    %v341 = vstv %s200
    %v342 = vmul.f32 %v316, %v341
    %v343 = vstv %s210
    %v344 = vmul.f32 %v324, %v343
    %v345 = vadd.f32 %v326, %v328
    %v346 = vadd.f32 %v330, %v332
    %v347 = vadd.f32 %v334, %v336
    %v348 = vadd.f32 %v338, %v340
    %v349 = vadd.f32 %v342, %v344
    %v350 = vadd.f32 %v345, %v346
    %v351 = vadd.f32 %v347, %v348
    %v352 = vadd.f32 %v350, %v351
    %v353 = vadd.f32 %v352, %v349
    %v354 = vstv %s220
    %v355 = vadd.f32 %v353, %v354
    %v356 = vmax.f32 %v355, 0.0
    %v357 = vstv %s230
    %v358 = vmul.f32 %v356, %v357
    %v359 = vstv %s121
    %v360 = vmul.f32 %v252, %v359
    %v361 = vstv %s131
    %v362 = vmul.f32 %v260, %v361
    %v363 = vstv %s141
    %v364 = vmul.f32 %v268, %v363
    %v365 = vstv %s151
    %v366 = vmul.f32 %v276, %v365
    %v367 = vstv %s161
    %v368 = vmul.f32 %v284, %v367
    %v369 = vstv %s171
    %v370 = vmul.f32 %v292, %v369
    %v371 = vstv %s181
    %v372 = vmul.f32 %v300, %v371
    %v373 = vstv %s191
    %v374 = vmul.f32 %v308, %v373
    %v375 = vstv %s201
    %v376 = vmul.f32 %v316, %v375
    %v377 = vstv %s211
    %v378 = vmul.f32 %v324, %v377
    %v379 = vadd.f32 %v360, %v362
    %v380 = vadd.f32 %v364, %v366
    %v381 = vadd.f32 %v368, %v370
    %v382 = vadd.f32 %v372, %v374
    %v383 = vadd.f32 %v376, %v378
    %v384 = vadd.f32 %v379, %v380
    %v385 = vadd.f32 %v381, %v382
    %v386 = vadd.f32 %v384, %v385
    %v387 = vadd.f32 %v386, %v383
    %v388 = vstv %s221
    %v389 = vadd.f32 %v387, %v388
    %v390 = vmax.f32 %v389, 0.0
    %v391 = vstv %s231
    %v392 = vmul.f32 %v390, %v391
    %v393 = vstv %s122
    %v394 = vmul.f32 %v252, %v393
    %v395 = vstv %s132
    %v396 = vmul.f32 %v260, %v395
    %v397 = vstv %s142
    %v398 = vmul.f32 %v268, %v397
    %v399 = vstv %s152
    %v400 = vmul.f32 %v276, %v399
    %v401 = vstv %s162
    %v402 = vmul.f32 %v284, %v401
    %v403 = vstv %s172
    %v404 = vmul.f32 %v292, %v403
    %v405 = vstv %s182
    %v406 = vmul.f32 %v300, %v405
    %v407 = vstv %s192
    %v408 = vmul.f32 %v308, %v407
    %v409 = vstv %s202
    %v410 = vmul.f32 %v316, %v409
    %v411 = vstv %s212
    %v412 = vmul.f32 %v324, %v411
    %v413 = vadd.f32 %v394, %v396
    %v414 = vadd.f32 %v398, %v400
    %v415 = vadd.f32 %v402, %v404
    %v416 = vadd.f32 %v406, %v408
    %v417 = vadd.f32 %v410, %v412
    %v418 = vadd.f32 %v413, %v414
    %v419 = vadd.f32 %v415, %v416
    %v420 = vadd.f32 %v418, %v419
    %v421 = vadd.f32 %v420, %v417
    %v422 = vstv %s222
    %v423 = vadd.f32 %v421, %v422
    %v424 = vmax.f32 %v423, 0.0
    %v425 = vstv %s232
    %v426 = vmul.f32 %v424, %v425
    %v427 = vadd.f32 %v358, %v426
    %v428 = vstv %s123
    %v429 = vmul.f32 %v252, %v428
    %v430 = vstv %s133
    %v431 = vmul.f32 %v260, %v430
    %v432 = vstv %s143
    %v433 = vmul.f32 %v268, %v432
    %v434 = vstv %s153
    %v435 = vmul.f32 %v276, %v434
    %v436 = vstv %s163
    %v437 = vmul.f32 %v284, %v436
    %v438 = vstv %s173
    %v439 = vmul.f32 %v292, %v438
    %v440 = vstv %s183
    %v441 = vmul.f32 %v300, %v440
    %v442 = vstv %s193
    %v443 = vmul.f32 %v308, %v442
    %v444 = vstv %s203
    %v445 = vmul.f32 %v316, %v444
    %v446 = vstv %s213
    %v447 = vmul.f32 %v324, %v446
    %v448 = vadd.f32 %v429, %v431
    %v449 = vadd.f32 %v433, %v435
    %v450 = vadd.f32 %v437, %v439
    %v451 = vadd.f32 %v441, %v443
    %v452 = vadd.f32 %v445, %v447
    %v453 = vadd.f32 %v448, %v449
    %v454 = vadd.f32 %v450, %v451
    %v455 = vadd.f32 %v453, %v454
    %v456 = vadd.f32 %v455, %v452
    %v457 = vstv %s223
    %v458 = vadd.f32 %v456, %v457
    %v459 = vmax.f32 %v458, 0.0
    %v460 = vstv %s233
    %v461 = vmul.f32 %v459, %v460
    %v462 = vadd.f32 %v392, %v461
    %v463 = vstv %s124
    %v464 = vmul.f32 %v252, %v463
    %v465 = vstv %s134
    %v466 = vmul.f32 %v260, %v465
    %v467 = vstv %s144
    %v468 = vmul.f32 %v268, %v467
    %v469 = vstv %s154
    %v470 = vmul.f32 %v276, %v469
    %v471 = vstv %s164
    %v472 = vmul.f32 %v284, %v471
    %v473 = vstv %s174
    %v474 = vmul.f32 %v292, %v473
    %v475 = vstv %s184
    %v476 = vmul.f32 %v300, %v475
    %v477 = vstv %s194
    %v478 = vmul.f32 %v308, %v477
    %v479 = vstv %s204
    %v480 = vmul.f32 %v316, %v479
    %v481 = vstv %s214
    %v482 = vmul.f32 %v324, %v481
    %v483 = vadd.f32 %v464, %v466
    %v484 = vadd.f32 %v468, %v470
    %v485 = vadd.f32 %v472, %v474
    %v486 = vadd.f32 %v476, %v478
    %v487 = vadd.f32 %v480, %v482
    %v488 = vadd.f32 %v483, %v484
    %v489 = vadd.f32 %v485, %v486
    %v490 = vadd.f32 %v488, %v489
    %v491 = vadd.f32 %v490, %v487
    %v492 = vstv %s224
    %v493 = vadd.f32 %v491, %v492
    %v494 = vmax.f32 %v493, 0.0
    %v495 = vstv %s234
    %v496 = vmul.f32 %v494, %v495
    %v497 = vadd.f32 %v427, %v496
    %v498 = vstv %s125
    %v499 = vmul.f32 %v252, %v498
    %v500 = vstv %s135
    %v501 = vmul.f32 %v260, %v500
    %v502 = vstv %s145
    %v503 = vmul.f32 %v268, %v502
    %v504 = vstv %s155
    %v505 = vmul.f32 %v276, %v504
    %v506 = vstv %s165
    %v507 = vmul.f32 %v284, %v506
    %v508 = vstv %s175
    %v509 = vmul.f32 %v292, %v508
    %v510 = vstv %s185
    %v511 = vmul.f32 %v300, %v510
    %v512 = vstv %s195
    %v513 = vmul.f32 %v308, %v512
    %v514 = vstv %s205
    %v515 = vmul.f32 %v316, %v514
    %v516 = vstv %s215
    %v517 = vmul.f32 %v324, %v516
    %v518 = vadd.f32 %v499, %v501
    %v519 = vadd.f32 %v503, %v505
    %v520 = vadd.f32 %v507, %v509
    %v521 = vadd.f32 %v511, %v513
    %v522 = vadd.f32 %v515, %v517
    %v523 = vadd.f32 %v518, %v519
    %v524 = vadd.f32 %v520, %v521
    %v525 = vadd.f32 %v523, %v524
    %v526 = vadd.f32 %v525, %v522
    %v527 = vstv %s225
    %v528 = vadd.f32 %v526, %v527
    %v529 = vmax.f32 %v528, 0.0
    %v530 = vstv %s235
    %v531 = vmul.f32 %v529, %v530
    %v532 = vadd.f32 %v462, %v531
    %v533 = vstv %s126
    %v534 = vmul.f32 %v252, %v533
    %v535 = vstv %s136
    %v536 = vmul.f32 %v260, %v535
    %v537 = vstv %s146
    %v538 = vmul.f32 %v268, %v537
    %v539 = vstv %s156
    %v540 = vmul.f32 %v276, %v539
    %v541 = vstv %s166
    %v542 = vmul.f32 %v284, %v541
    %v543 = vstv %s176
    %v544 = vmul.f32 %v292, %v543
    %v545 = vstv %s186
    %v546 = vmul.f32 %v300, %v545
    %v547 = vstv %s196
    %v548 = vmul.f32 %v308, %v547
    %v549 = vstv %s206
    %v550 = vmul.f32 %v316, %v549
    %v551 = vstv %s216
    %v552 = vmul.f32 %v324, %v551
    %v553 = vadd.f32 %v534, %v536
    %v554 = vadd.f32 %v538, %v540
    %v555 = vadd.f32 %v542, %v544
    %v556 = vadd.f32 %v546, %v548
    %v557 = vadd.f32 %v550, %v552
    %v558 = vadd.f32 %v553, %v554
    %v559 = vadd.f32 %v555, %v556
    %v560 = vadd.f32 %v558, %v559
    %v561 = vadd.f32 %v560, %v557
    %v562 = vstv %s226
    %v563 = vadd.f32 %v561, %v562
    %v564 = vmax.f32 %v563, 0.0
    %v565 = vstv %s236
    %v566 = vmul.f32 %v564, %v565
    %v567 = vadd.f32 %v497, %v566
    %v568 = vstv %s127
    %v569 = vmul.f32 %v252, %v568
    %v570 = vstv %s137
    %v571 = vmul.f32 %v260, %v570
    %v572 = vstv %s147
    %v573 = vmul.f32 %v268, %v572
    %v574 = vstv %s157
    %v575 = vmul.f32 %v276, %v574
    %v576 = vstv %s167
    %v577 = vmul.f32 %v284, %v576
    %v578 = vstv %s177
    %v579 = vmul.f32 %v292, %v578
    %v580 = vstv %s187
    %v581 = vmul.f32 %v300, %v580
    %v582 = vstv %s197
    %v583 = vmul.f32 %v308, %v582
    %v584 = vstv %s207
    %v585 = vmul.f32 %v316, %v584
    %v586 = vstv %s217
    %v587 = vmul.f32 %v324, %v586
    %v588 = vadd.f32 %v569, %v571
    %v589 = vadd.f32 %v573, %v575
    %v590 = vadd.f32 %v577, %v579
    %v591 = vadd.f32 %v581, %v583
    %v592 = vadd.f32 %v585, %v587
    %v593 = vadd.f32 %v588, %v589
    %v594 = vadd.f32 %v590, %v591
    %v595 = vadd.f32 %v593, %v594
    %v596 = vadd.f32 %v595, %v592
    %v597 = vstv %s227
    %v598 = vadd.f32 %v596, %v597
    %v599 = vmax.f32 %v598, 0.0
    %v600 = vstv %s237
    %v601 = vmul.f32 %v599, %v600
    %v602 = vadd.f32 %v532, %v601
    %v603 = vstv %s128
    %v604 = vmul.f32 %v252, %v603
    %v605 = vstv %s138
    %v606 = vmul.f32 %v260, %v605
    %v607 = vstv %s148
    %v608 = vmul.f32 %v268, %v607
    %v609 = vstv %s158
    %v610 = vmul.f32 %v276, %v609
    %v611 = vstv %s168
    %v612 = vmul.f32 %v284, %v611
    %v613 = vstv %s178
    %v614 = vmul.f32 %v292, %v613
    %v615 = vstv %s188
    %v616 = vmul.f32 %v300, %v615
    %v617 = vstv %s198
    %v618 = vmul.f32 %v308, %v617
    %v619 = vstv %s208
    %v620 = vmul.f32 %v316, %v619
    %v621 = vstv %s218
    %v622 = vmul.f32 %v324, %v621
    %v623 = vadd.f32 %v604, %v606
    %v624 = vadd.f32 %v608, %v610
    %v625 = vadd.f32 %v612, %v614
    %v626 = vadd.f32 %v616, %v618
    %v627 = vadd.f32 %v620, %v622
    %v628 = vadd.f32 %v623, %v624
    %v629 = vadd.f32 %v625, %v626
    %v630 = vadd.f32 %v628, %v629
    %v631 = vadd.f32 %v630, %v627
    %v632 = vstv %s228
    %v633 = vadd.f32 %v631, %v632
    %v634 = vmax.f32 %v633, 0.0
    %v635 = vstv %s238
    %v636 = vmul.f32 %v634, %v635
    %v637 = vadd.f32 %v567, %v636
    %v638 = vstv %s129
    %v639 = vmul.f32 %v252, %v638
    %v640 = vstv %s139
    %v641 = vmul.f32 %v260, %v640
    %v642 = vstv %s149
    %v643 = vmul.f32 %v268, %v642
    %v644 = vstv %s159
    %v645 = vmul.f32 %v276, %v644
    %v646 = vstv %s169
    %v647 = vmul.f32 %v284, %v646
    %v648 = vstv %s179
    %v649 = vmul.f32 %v292, %v648
    %v650 = vstv %s189
    %v651 = vmul.f32 %v300, %v650
    %v652 = vstv %s199
    %v653 = vmul.f32 %v308, %v652
    %v654 = vstv %s209
    %v655 = vmul.f32 %v316, %v654
    %v656 = vstv %s219
    %v657 = vmul.f32 %v324, %v656
    %v658 = vadd.f32 %v639, %v641
    %v659 = vadd.f32 %v643, %v645
    %v660 = vadd.f32 %v647, %v649
    %v661 = vadd.f32 %v651, %v653
    %v662 = vadd.f32 %v655, %v657
    %v663 = vadd.f32 %v658, %v659
    %v664 = vadd.f32 %v660, %v661
    %v665 = vadd.f32 %v663, %v664
    %v666 = vadd.f32 %v665, %v662
    %v667 = vstv %s229
    %v668 = vadd.f32 %v666, %v667
    %v669 = vmax.f32 %v668, 0.0
    %v670 = vstv %s239
    %v671 = vmul.f32 %v669, %v670
    %v672 = vadd.f32 %v602, %v671
    %v673 = vadd.f32 %v637, %v672
    %v674 = vstv %s240
    %v675 = vadd.f32 %v673, %v674
    %676 = vst [vmem:[%s7] sm:$0xff] %v675
    // Predicated region
    $region50: #{circle_model_v2_forward.1} parent=1 // pred_check
      _
    $region51: #{circle_model_v2_forward.1} parent=1 // pred_check_branch
      %678 = sbr.rel (0) target = $region53
    $region52: #{circle_model_v2_forward.1} parent=1 // pred_region
      _
    $region53: #{circle_model_v2_forward.1} parent=1 // pred_fallthru
      _
    // Predicated region
    $region54: #{circle_model_v2_forward.1} parent=1 // pred_check
      _
    $region55: #{circle_model_v2_forward.1} parent=1 // pred_check_branch
      %680 = sbr.rel (0) target = $region57
    $region56: #{circle_model_v2_forward.1} parent=1 // pred_region
      _
    $region57: #{circle_model_v2_forward.1} parent=1 // pred_fallthru
      _
    %681 = vsyncpa [#allocation4], 1
    %682 = vsyncpa [#allocation6], 1
    %683 = vsyncpa [#allocation9], 1

</llo_original>
